<compile_context>
chip_gen: v5e
topology: v5e:2x2
jax: 0.10.0
libtpu: 0.0.40
codegen_flags: <defaults>
</compile_context>

<pallas_src>
import functools

import jax
import jax.numpy as jnp
from jax.experimental import pallas as pl
from jax.experimental.pallas import tpu as pltpu


def mlp_kernel(x_ref, w1_ref, b1_ref, w2_ref, b2_ref, w3_ref, b3_ref, o_ref):
    # Hoist single loads of the (1, F) bias rows.
    b1 = b1_ref[...]                                   # (1, 256) f32
    b2 = b2_ref[...]                                   # (1, 256) f32
    b3 = b3_ref[...]                                   # (1, 128) f32

    # In-kernel cast: x arrives f32 straight from HBM, cast to bf16 for the MXU.
    x = x_ref[...].astype(jnp.bfloat16)                # (tb, 784) bf16

    # Layer 1: bf16 matmul, f32 accumulate, bias+ReLU in f32, cast for next dot.
    h1 = jnp.dot(x, w1_ref[...], preferred_element_type=jnp.float32)
    h1 = jnp.maximum(h1 + b1, 0.0).astype(jnp.bfloat16)

    # Layer 2.
    h2 = jnp.dot(h1, w2_ref[...], preferred_element_type=jnp.float32)
    h2 = jnp.maximum(h2 + b2, 0.0).astype(jnp.bfloat16)

    # Output layer (no activation); lane-dense (tb, 128) f32 store.
    out = jnp.dot(h2, w3_ref[...], preferred_element_type=jnp.float32)
    o_ref[...] = (out + b3).astype(o_ref.dtype)


def prepare_params(params):
    """One-time param prep: pad feature dims to lane-dense multiples of 128 and
    cast weights to bf16 (biases stay f32).  Zero padding keeps the math exact:
    padded bias = 0 -> padded hidden columns stay 0 through ReLU, padded rows of
    the next weight only multiply those zeros, padded output columns are sliced
    off by the wrapper."""
    w1, b1, w2, b2, w3, b3 = params
    hid = w1.shape[1]                                  # 250
    num_classes = w3.shape[1]                          # 10
    hid_p = 128 * pl.cdiv(hid, 128)                    # 256
    out_p = 128 * pl.cdiv(num_classes, 128)            # 128

    w1p = jnp.pad(w1, ((0, 0), (0, hid_p - hid))).astype(jnp.bfloat16)
    b1p = jnp.pad(b1, (0, hid_p - hid)).reshape(1, -1).astype(jnp.float32)
    w2p = jnp.pad(w2, ((0, hid_p - hid), (0, hid_p - hid))).astype(jnp.bfloat16)
    b2p = jnp.pad(b2, (0, hid_p - hid)).reshape(1, -1).astype(jnp.float32)
    w3p = jnp.pad(w3, ((0, hid_p - hid), (0, out_p - num_classes))).astype(jnp.bfloat16)
    b3p = jnp.pad(b3, (0, out_p - num_classes)).reshape(1, -1).astype(jnp.float32)
    return (w1p, b1p, w2p, b2p, w3p, b3p), num_classes


def _pick_tb(batch):
    """Largest tile that still leaves >= 2 grid steps (v7x megacore), 128 floor."""
    for cand in (512, 256, 128):
        if batch >= 2 * cand:
            return cand
    return 128


def mlp_forward(x, prepared, num_classes, *, tb=None):
    """x: (B, C, H, W) float32 (NCHW, like PyTorch). Returns (B, num_classes) f32."""
    w1p, b1p, w2p, b2p, w3p, b3p = prepared
    B = x.shape[0]
    in_feat = w1p.shape[0]                             # 784
    hid_p = w1p.shape[1]                               # 256
    out_p = w3p.shape[1]                               # 128

    if tb is None:
        tb = _pick_tb(B)

    # torch.flatten(x, 1): contiguous reshape (no extra HBM pass); stays f32 —
    # the bf16 cast happens inside the kernel.
    x_flat = x.reshape(B, -1)

    # No batch padding of x: Pallas masks the ragged final block.  The garbage
    # rows of the last tile only produce output rows beyond B, which Pallas
    # drops on store.
    grid = (pl.cdiv(B, tb),)

    # Weights/biases: full-block, same block every grid step -> VMEM-resident.
    def resident(shape):
        return pl.BlockSpec(shape, lambda i: (0, 0))

    out_padded = pl.pallas_call(
        mlp_kernel,
        out_shape=jax.ShapeDtypeStruct((B, out_p), jnp.float32),
        grid_spec=pltpu.PrefetchScalarGridSpec(
            num_scalar_prefetch=0,
            grid=grid,
            in_specs=[
                pl.BlockSpec((tb, in_feat), lambda i: (i, 0)),   # x tile (pipelined)
                resident((in_feat, hid_p)),                      # w1
                resident((1, hid_p)),                            # b1
                resident((hid_p, hid_p)),                        # w2
                resident((1, hid_p)),                            # b2
                resident((hid_p, out_p)),                        # w3
                resident((1, out_p)),                            # b3
            ],
            out_specs=pl.BlockSpec((tb, out_p), lambda i: (i, 0)),
        ),
        compiler_params=pltpu.CompilerParams(
            dimension_semantics=("parallel",),                   # megacore on v7x
        ),
    )(x_flat, w1p, b1p, w2p, b2p, w3p, b3p)

    return out_padded[:, :num_classes]


def init_params(key, num_classes=10):
    """Deterministic init mimicking PyTorch nn.Linear defaults:
    U(-1/sqrt(fan_in), 1/sqrt(fan_in)) for both weight and bias.
    Weights stored as (in_features, out_features) so the kernel does x @ W."""
    dims = [(784, 250), (250, 250), (250, num_classes)]
    params = []
    for fan_in, fan_out in dims:
        key, kw, kb = jax.random.split(key, 3)
        bound = 1.0 / jnp.sqrt(float(fan_in))
        w = jax.random.uniform(kw, (fan_in, fan_out), jnp.float32, -bound, bound)
        b = jax.random.uniform(kb, (fan_out,), jnp.float32, -bound, bound)
        params += [w, b]
    return tuple(params)


if __name__ == "__main__":
    key = jax.random.PRNGKey(0)
    kx, kp = jax.random.split(key)

    # MNIST-like input: batch=8, NCHW (8, 1, 28, 28) -> flattened to 784 features.
    x = jax.random.normal(kx, (8, 1, 28, 28), dtype=jnp.float32)
    params = init_params(kp, num_classes=10)

    # One-time parameter preparation (pad + bf16 cast), hoisted out of forward.
    prepared, num_classes = prepare_params(params)
    prepared = jax.block_until_ready(prepared)

    fwd = jax.jit(functools.partial(mlp_forward, num_classes=num_classes))
    out = fwd(x, prepared)
    out = jax.block_until_ready(out)
    assert out.shape == (8, 10)

    # Reference with the same numerics (bf16 operands, f32 accumulation).
    w1, b1, w2, b2, w3, b3 = params
    xf = x.reshape(x.shape[0], -1).astype(jnp.bfloat16)
    h = jnp.dot(xf, w1.astype(jnp.bfloat16), preferred_element_type=jnp.float32)
    h = jnp.maximum(h + b1, 0.0).astype(jnp.bfloat16)
    h = jnp.dot(h, w2.astype(jnp.bfloat16), preferred_element_type=jnp.float32)
    h = jnp.maximum(h + b2, 0.0).astype(jnp.bfloat16)
    ref = jnp.dot(h, w3.astype(jnp.bfloat16), preferred_element_type=jnp.float32) + b3

    assert jnp.allclose(out, ref, atol=1e-2, rtol=1e-2), (
        jnp.max(jnp.abs(out - ref)))

    print("KERNEL_OK")
</pallas_src>

<mosaic_0001>
module attributes {stable_mosaic.version = 11 : i64} {
  func.func @mlp_kernel(%arg0: i32, %arg1: memref<128x784xf32, #tpu.memory_space<vmem>>, %arg2: memref<784x256xbf16, #tpu.memory_space<vmem>>, %arg3: memref<1x256xf32, #tpu.memory_space<vmem>>, %arg4: memref<256x256xbf16, #tpu.memory_space<vmem>>, %arg5: memref<1x256xf32, #tpu.memory_space<vmem>>, %arg6: memref<256x128xbf16, #tpu.memory_space<vmem>>, %arg7: memref<1x128xf32, #tpu.memory_space<vmem>>, %arg8: memref<128x128xf32, #tpu.memory_space<vmem>>) attributes {dimension_semantics = [#tpu.dimension_semantics<parallel>], iteration_bounds = array<i64: 1>, scalar_prefetch = 0 : i64, scratch_operands = 0 : i64, tpu.core_type = #tpu.core_type<tc>, window_params = [{transform_indices = @transform_0, window_bounds = array<i64: 128, 784>}, {pipeline_mode = #tpu.pipeline_mode<synchronous>, transform_indices = @transform_1, window_bounds = array<i64: 784, 256>}, {pipeline_mode = #tpu.pipeline_mode<synchronous>, transform_indices = @transform_2, window_bounds = array<i64: 1, 256>}, {pipeline_mode = #tpu.pipeline_mode<synchronous>, transform_indices = @transform_3, window_bounds = array<i64: 256, 256>}, {pipeline_mode = #tpu.pipeline_mode<synchronous>, transform_indices = @transform_4, window_bounds = array<i64: 1, 256>}, {pipeline_mode = #tpu.pipeline_mode<synchronous>, transform_indices = @transform_5, window_bounds = array<i64: 256, 128>}, {pipeline_mode = #tpu.pipeline_mode<synchronous>, transform_indices = @transform_6, window_bounds = array<i64: 1, 128>}, {transform_indices = @transform_7, window_bounds = array<i64: 128, 128>}]} {
    %c0 = arith.constant 0 : index
    %c0_0 = arith.constant 0 : index
    %0 = vector.load %arg3[%c0, %c0_0] : memref<1x256xf32, #tpu.memory_space<vmem>>, vector<1x256xf32>
    %c0_1 = arith.constant 0 : index
    %c0_2 = arith.constant 0 : index
    %1 = vector.load %arg5[%c0_1, %c0_2] : memref<1x256xf32, #tpu.memory_space<vmem>>, vector<1x256xf32>
    %c0_3 = arith.constant 0 : index
    %c0_4 = arith.constant 0 : index
    %2 = vector.load %arg7[%c0_3, %c0_4] : memref<1x128xf32, #tpu.memory_space<vmem>>, vector<1x128xf32>
    %c0_5 = arith.constant 0 : index
    %c0_6 = arith.constant 0 : index
    %3 = vector.load %arg1[%c0_5, %c0_6] : memref<128x784xf32, #tpu.memory_space<vmem>>, vector<128x784xf32>
    %4 = arith.truncf %3 : vector<128x784xf32> to vector<128x784xbf16>
    %c0_7 = arith.constant 0 : index
    %c0_8 = arith.constant 0 : index
    %5 = vector.load %arg2[%c0_7, %c0_8] : memref<784x256xbf16, #tpu.memory_space<vmem>>, vector<784x256xbf16>
    %cst = arith.constant dense<0.000000e+00> : vector<128x256xf32>
    %6 = tpu.matmul %4, %5, %cst {dimension_numbers = #tpu.dot_dimension_numbers<[1], [0], [0], [1], [0, 0, 1, 1], [], []>} : vector<128x784xbf16>, vector<784x256xbf16>, vector<128x256xf32> -> vector<128x256xf32>
    %7 = vector.broadcast %0 : vector<1x256xf32> to vector<128x256xf32>
    %8 = arith.addf %6, %7 : vector<128x256xf32>
    %cst_9 = arith.constant 0.000000e+00 : f32
    %9 = vector.broadcast %cst_9 : f32 to vector<128x256xf32>
    %10 = arith.maximumf %8, %9 : vector<128x256xf32>
    %11 = arith.truncf %10 : vector<128x256xf32> to vector<128x256xbf16>
    %c0_10 = arith.constant 0 : index
    %c0_11 = arith.constant 0 : index
    %12 = vector.load %arg4[%c0_10, %c0_11] : memref<256x256xbf16, #tpu.memory_space<vmem>>, vector<256x256xbf16>
    %cst_12 = arith.constant dense<0.000000e+00> : vector<128x256xf32>
    %13 = tpu.matmul %11, %12, %cst_12 {dimension_numbers = #tpu.dot_dimension_numbers<[1], [0], [0], [1], [0, 0, 1, 1], [], []>} : vector<128x256xbf16>, vector<256x256xbf16>, vector<128x256xf32> -> vector<128x256xf32>
    %14 = vector.broadcast %1 : vector<1x256xf32> to vector<128x256xf32>
    %15 = arith.addf %13, %14 : vector<128x256xf32>
    %cst_13 = arith.constant 0.000000e+00 : f32
    %16 = vector.broadcast %cst_13 : f32 to vector<128x256xf32>
    %17 = arith.maximumf %15, %16 : vector<128x256xf32>
    %18 = arith.truncf %17 : vector<128x256xf32> to vector<128x256xbf16>
    %c0_14 = arith.constant 0 : index
    %c0_15 = arith.constant 0 : index
    %19 = vector.load %arg6[%c0_14, %c0_15] : memref<256x128xbf16, #tpu.memory_space<vmem>>, vector<256x128xbf16>
    %cst_16 = arith.constant dense<0.000000e+00> : vector<128x128xf32>
    %20 = tpu.matmul %18, %19, %cst_16 {dimension_numbers = #tpu.dot_dimension_numbers<[1], [0], [0], [1], [0, 0, 1, 1], [], []>} : vector<128x256xbf16>, vector<256x128xbf16>, vector<128x128xf32> -> vector<128x128xf32>
    %21 = vector.broadcast %2 : vector<1x128xf32> to vector<128x128xf32>
    %22 = arith.addf %20, %21 : vector<128x128xf32>
    %c0_17 = arith.constant 0 : index
    %c0_18 = arith.constant 0 : index
    %23 = vector.load %arg8[%c0_17, %c0_18] : memref<128x128xf32, #tpu.memory_space<vmem>>, vector<128x128xf32>
    tpu.vector_store %arg8[%c0_17, %c0_18], %22 {strides = array<i32>} : memref<128x128xf32, #tpu.memory_space<vmem>>, vector<128x128xf32>,
    return
  }
  func.func @transform_0(%arg0: i32) -> (i32, i32) {
    %c0_i32 = arith.constant 0 : i32
    %c0_i32_0 = arith.constant 0 : i32
    return %arg0, %c0_i32 : i32, i32
  }
  func.func @transform_1(%arg0: i32) -> (i32, i32) {
    %c0_i32 = arith.constant 0 : i32
    %c0_i32_0 = arith.constant 0 : i32
    %c0_i32_1 = arith.constant 0 : i32
    return %c0_i32, %c0_i32_0 : i32, i32
  }
  func.func @transform_2(%arg0: i32) -> (i32, i32) {
    %c0_i32 = arith.constant 0 : i32
    %c0_i32_0 = arith.constant 0 : i32
    %c0_i32_1 = arith.constant 0 : i32
    return %c0_i32, %c0_i32_0 : i32, i32
  }
  func.func @transform_3(%arg0: i32) -> (i32, i32) {
    %c0_i32 = arith.constant 0 : i32
    %c0_i32_0 = arith.constant 0 : i32
    %c0_i32_1 = arith.constant 0 : i32
    return %c0_i32, %c0_i32_0 : i32, i32
  }
  func.func @transform_4(%arg0: i32) -> (i32, i32) {
    %c0_i32 = arith.constant 0 : i32
    %c0_i32_0 = arith.constant 0 : i32
    %c0_i32_1 = arith.constant 0 : i32
    return %c0_i32, %c0_i32_0 : i32, i32
  }
  func.func @transform_5(%arg0: i32) -> (i32, i32) {
    %c0_i32 = arith.constant 0 : i32
    %c0_i32_0 = arith.constant 0 : i32
    %c0_i32_1 = arith.constant 0 : i32
    return %c0_i32, %c0_i32_0 : i32, i32
  }
  func.func @transform_6(%arg0: i32) -> (i32, i32) {
    %c0_i32 = arith.constant 0 : i32
    %c0_i32_0 = arith.constant 0 : i32
    %c0_i32_1 = arith.constant 0 : i32
    return %c0_i32, %c0_i32_0 : i32, i32
  }
  func.func @transform_7(%arg0: i32) -> (i32, i32) {
    %c0_i32 = arith.constant 0 : i32
    %c0_i32_0 = arith.constant 0 : i32
    return %arg0, %c0_i32 : i32, i32
  }
}

</mosaic_0001>

<llo_original>
// kernel: mlp_forward.1
$region0: #{mlp_forward.1}
  #allocation0 [shape = 'u32[]', space=smem, size = 0x4, offset = 0x4, fixed_abs, tag = 'smem constant byte address 0x4 - core index']
  #allocation1 [shape = 'u32[72,128]{1,0:T(1,128)}', space=vmem, size = 0x9000, scoped, tag = 'internal scratch']
  %s0 = inlined_call_operand.vmem [shape: f32[8,784], index: 0, kind: input, shape index: {}]
  %s1 = inlined_call_operand.vmem [shape: bf16[784,256], index: 1, kind: input, shape index: {}]
  %s2 = inlined_call_operand.vmem [shape: f32[1,256], index: 2, kind: input, shape index: {}]
  %s3 = inlined_call_operand.hbm [shape: bf16[256,256], index: 3, kind: input, shape index: {}]
  %s4 = inlined_call_operand.vmem [shape: f32[1,256], index: 4, kind: input, shape index: {}]
  %s5 = inlined_call_operand.hbm [shape: bf16[256,128], index: 5, kind: input, shape index: {}]
  %s6 = inlined_call_operand.vmem [shape: f32[1,128], index: 6, kind: input, shape index: {}]
  %s7 = inlined_call_operand.hbm [shape: f32[8,128], index: 7, kind: output, shape index: {}]
  %s8 = sld [smem:[#allocation0]]
  $region46: #{mlp_forward.1} parent=0
    _
  %s10 = ssub.s32 1, %s8
  %s11 = scalar_select 0, %s10, %s8
  $region1: #{mlp_forward.1} parent=0
    #allocation2 [shape = 'u8[131072]{0}', space=vmem, size = 0x20000, scoped, tag = 'input window, operand 3, single buffered']
    #allocation3 [shape = 's32[1]{0}', space=sflag, size = 0x4, scoped, tag = 'scoped memory for mlp_forward.1']
    #allocation4 [shape = 's32[1]{0}', space=sflag, size = 0x4, scoped, tag = 'scoped memory for mlp_forward.1']
    #allocation5 [shape = 'u8[65536]{0}', space=vmem, size = 0x10000, scoped, tag = 'input window, operand 5, single buffered']
    #allocation6 [shape = 's32[1]{0}', space=sflag, size = 0x4, scoped, tag = 'scoped memory for mlp_forward.1']
    #allocation7 [shape = 'u8[65536]{0}', space=vmem, size = 0x10000, scoped, tag = 'output window, operand 0, single buffered']
    %12 = vsyncpa [#allocation3], 0
    %13 = vsyncpa [#allocation6], 0
    %14 = vsyncpa [#allocation4], 0
    // Predicated region
    $region2: #{mlp_forward.1} parent=1 // pred_check
      _
    $region3: #{mlp_forward.1} parent=1 // pred_check_branch
      %16 = sbr.rel (0) target = $region5
    $region4: #{mlp_forward.1} parent=1 // pred_region
      _
    $region5: #{mlp_forward.1} parent=1 // pred_fallthru
      _
    // Predicated region
    $region6: #{mlp_forward.1} parent=1 // pred_check
      _
    $region7: #{mlp_forward.1} parent=1 // pred_check_branch
      %18 = sbr.rel (0) target = $region9
    $region8: #{mlp_forward.1} parent=1 // pred_region
      _
    $region9: #{mlp_forward.1} parent=1 // pred_fallthru
      _
    // Predicated region
    $region10: #{mlp_forward.1} parent=1 // pred_check
      _
    $region11: #{mlp_forward.1} parent=1 // pred_check_branch
      %20 = sbr.rel (0) target = $region13
    $region12: #{mlp_forward.1} parent=1 // pred_region
      _
    $region13: #{mlp_forward.1} parent=1 // pred_fallthru
      _
    // Predicated region
    $region14: #{mlp_forward.1} parent=1 // pred_check
      _
    $region15: #{mlp_forward.1} parent=1 // pred_check_branch
      %22 = sbr.rel (0) target = $region17
    $region16: #{mlp_forward.1} parent=1 // pred_region
      %24 = vsyncadd [#allocation3], 0
      %s25 = sshll.u32 %s3, 4
      %s26 = int_to_ptr.hbm [resolvable:$true] %s25
      %s27 = sshll.u32 [#allocation2], 4
      %s28 = int_to_ptr.vmem [resolvable:$true] %s27
      %33 = dma.hbm_to_vmem [thread:$0]  %s26, 4096, %s28, [#allocation3], 128, 128, 8
    $region17: #{mlp_forward.1} parent=1 // pred_fallthru
      _
    // Predicated region
    $region18: #{mlp_forward.1} parent=1 // pred_check
      _
    $region19: #{mlp_forward.1} parent=1 // pred_check_branch
      %35 = sbr.rel (0) target = $region21
    $region20: #{mlp_forward.1} parent=1 // pred_region
      _
    $region21: #{mlp_forward.1} parent=1 // pred_fallthru
      _
    // Predicated region
    $region22: #{mlp_forward.1} parent=1 // pred_check
      _
    $region23: #{mlp_forward.1} parent=1 // pred_check_branch
      %37 = sbr.rel (0) target = $region25
    $region24: #{mlp_forward.1} parent=1 // pred_region
      %39 = vsyncadd [#allocation6], 0
      %s40 = sshll.u32 %s5, 4
      %s41 = int_to_ptr.hbm [resolvable:$true] %s40
      %s42 = sshll.u32 [#allocation5], 4
      %s43 = int_to_ptr.vmem [resolvable:$true] %s42
      %48 = dma.hbm_to_vmem [thread:$0]  %s41, 2048, %s43, [#allocation6], 64, 64, 4
    $region25: #{mlp_forward.1} parent=1 // pred_fallthru
      _
    // Predicated region
    $region26: #{mlp_forward.1} parent=1 // pred_check
      _
    $region27: #{mlp_forward.1} parent=1 // pred_check_branch
      %50 = sbr.rel (0) target = $region29
    $region28: #{mlp_forward.1} parent=1 // pred_region
      _
    $region29: #{mlp_forward.1} parent=1 // pred_fallthru
      _
    // Predicated region
    $region30: #{mlp_forward.1} parent=1 // pred_check
      _
    $region31: #{mlp_forward.1} parent=1 // pred_check_branch
      %52 = sbr.rel (0) target = $region33
    $region32: #{mlp_forward.1} parent=1 // pred_region
      %54 = dma.done [#allocation3], 4096
    $region33: #{mlp_forward.1} parent=1 // pred_fallthru
      _
    // Predicated region
    $region34: #{mlp_forward.1} parent=1 // pred_check
      _
    $region35: #{mlp_forward.1} parent=1 // pred_check_branch
      %56 = sbr.rel (0) target = $region37
    $region36: #{mlp_forward.1} parent=1 // pred_region
      %58 = dma.done [#allocation6], 2048
    $region37: #{mlp_forward.1} parent=1 // pred_fallthru
      _
    %v60 = vld [vmem:[%s2] sm:$0x3]
    %v61 = vld [vmem:[%s4] sm:$0x3]
    %v62 = vld [vmem:[%s6] sm:$0x1]
    %v63 = vld [vmem:[%s0] sm:$0xff]
    %v64 = vld [vmem:[%s0 + $0x8] sm:$0xff]
    %v65 = vld [vmem:[%s0 + $0x10] sm:$0xff]
    %v66 = vld [vmem:[%s0 + $0x18] sm:$0xff]
    %v67 = vld [vmem:[%s0 + $0x20] sm:$0xff]
    %v68 = vld [vmem:[%s0 + $0x28] sm:$0xff]
    %v69 = vld [vmem:[%s0 + $0x30] sm:$0xff]
    %v70 = vld [vmem:[%s0 + $0x38] sm:$0xff]
    %v71 = vld [vmem:[%s0 + $0x40] sm:$0xff]
    %v72 = vld [vmem:[%s0 + $0x48] sm:$0xff]
    %v73 = vld [vmem:[%s0 + $0x50] sm:$0xff]
    %v74 = vld [vmem:[%s0 + $0x58] sm:$0xff]
    %v75 = vld [vmem:[%s0 + $0x60] sm:$0xff]
    %v76 = vld [vmem:[%s0 + $0x68] sm:$0xff]
    %v77 = vld [vmem:[%s0 + $0x70] sm:$0xff]
    %v78 = vld [vmem:[%s0 + $0x78] sm:$0xff]
    %v79 = vld [vmem:[%s0 + $0x80] sm:$0xff]
    %v80 = vld [vmem:[%s0 + $0x88] sm:$0xff]
    %v81 = vld [vmem:[%s0 + $0x90] sm:$0xff]
    %v82 = vld [vmem:[%s0 + $0x98] sm:$0xff]
    %v83 = vld [vmem:[%s0 + $0xa0] sm:$0xff]
    %v84 = vld [vmem:[%s0 + $0xa8] sm:$0xff]
    %v85 = vld [vmem:[%s0 + $0xb0] sm:$0xff]
    %v86 = vld [vmem:[%s0 + $0xb8] sm:$0xff]
    %v87 = vld [vmem:[%s0 + $0xc0] sm:$0xff]
    %v88 = vld [vmem:[%s0 + $0xc8] sm:$0xff]
    %v89 = vld [vmem:[%s0 + $0xd0] sm:$0xff]
    %v90 = vld [vmem:[%s0 + $0xd8] sm:$0xff]
    %v91 = vld [vmem:[%s0 + $0xe0] sm:$0xff]
    %v92 = vld [vmem:[%s0 + $0xe8] sm:$0xff]
    %v93 = vld [vmem:[%s0 + $0xf0] sm:$0xff]
    %v94 = vld [vmem:[%s0 + $0xf8] sm:$0xff]
    %v95 = vld [vmem:[%s0 + $0x100] sm:$0xff]
    %v96 = vld [vmem:[%s0 + $0x108] sm:$0xff]
    %v97 = vld [vmem:[%s0 + $0x110] sm:$0xff]
    %v98 = vld [vmem:[%s0 + $0x118] sm:$0xff]
    %v99 = vld [vmem:[%s0 + $0x120] sm:$0xff]
    %v100 = vld [vmem:[%s0 + $0x128] sm:$0xff]
    %v101 = vld [vmem:[%s0 + $0x130] sm:$0xff]
    %v102 = vld [vmem:[%s0 + $0x138] sm:$0xff]
    %v103 = vld [vmem:[%s0 + $0x140] sm:$0xff]
    %v104 = vld [vmem:[%s0 + $0x148] sm:$0xff]
    %v105 = vld [vmem:[%s0 + $0x150] sm:$0xff]
    %v106 = vld [vmem:[%s0 + $0x158] sm:$0xff]
    %v107 = vld [vmem:[%s0 + $0x160] sm:$0xff]
    %v108 = vld [vmem:[%s0 + $0x168] sm:$0xff]
    %v109 = vld [vmem:[%s0 + $0x170] sm:$0xff]
    %v110 = vld [vmem:[%s0 + $0x178] sm:$0xff]
    %v111 = vld [vmem:[%s0 + $0x180] sm:$0xff]
    %v112 = vld [vmem:[%s0 + $0x188] sm:$0xff]
    %v113 = vld [vmem:[%s0 + $0x190] sm:$0xff]
    %v114 = vld [vmem:[%s0 + $0x198] sm:$0xff]
    %v115 = vld [vmem:[%s0 + $0x1a0] sm:$0xff]
    %v116 = vld [vmem:[%s0 + $0x1a8] sm:$0xff]
    %v117 = vld [vmem:[%s0 + $0x1b0] sm:$0xff]
    %v118 = vld [vmem:[%s0 + $0x1b8] sm:$0xff]
    %v119 = vld [vmem:[%s0 + $0x1c0] sm:$0xff]
    %v120 = vld [vmem:[%s0 + $0x1c8] sm:$0xff]
    %v121 = vld [vmem:[%s0 + $0x1d0] sm:$0xff]
    %v122 = vld [vmem:[%s0 + $0x1d8] sm:$0xff]
    %v123 = vld [vmem:[%s0 + $0x1e0] sm:$0xff]
    %v124 = vld [vmem:[%s0 + $0x1e8] sm:$0xff]
    %v125 = vld [vmem:[%s0 + $0x1f0] sm:$0xff]
    %v126 = vld [vmem:[%s0 + $0x1f8] sm:$0xff]
    %v127 = vld [vmem:[%s0 + $0x200] sm:$0xff]
    %v128 = vld [vmem:[%s0 + $0x208] sm:$0xff]
    %v129 = vld [vmem:[%s0 + $0x210] sm:$0xff]
    %v130 = vld [vmem:[%s0 + $0x218] sm:$0xff]
    %v131 = vld [vmem:[%s0 + $0x220] sm:$0xff]
    %v132 = vld [vmem:[%s0 + $0x228] sm:$0xff]
    %v133 = vld [vmem:[%s0 + $0x230] sm:$0xff]
    %v134 = vld [vmem:[%s0 + $0x238] sm:$0xff]
    %v135 = vld [vmem:[%s0 + $0x240] sm:$0xff]
    %v136 = vld [vmem:[%s0 + $0x248] sm:$0xff]
    %v137 = vld [vmem:[%s0 + $0x250] sm:$0xff]
    %v138 = vld [vmem:[%s0 + $0x258] sm:$0xff]
    %v139 = vld [vmem:[%s0 + $0x260] sm:$0xff]
    %v140 = vld [vmem:[%s0 + $0x268] sm:$0xff]
    %v141 = vld [vmem:[%s0 + $0x270] sm:$0xff]
    %v142 = vld [vmem:[%s0 + $0x278] sm:$0xff]
    %v143 = vld [vmem:[%s0 + $0x280] sm:$0xff]
    %v144 = vld [vmem:[%s0 + $0x288] sm:$0xff]
    %v145 = vld [vmem:[%s0 + $0x290] sm:$0xff]
    %v146 = vld [vmem:[%s0 + $0x298] sm:$0xff]
    %v147 = vld [vmem:[%s0 + $0x2a0] sm:$0xff]
    %v148 = vld [vmem:[%s0 + $0x2a8] sm:$0xff]
    %v149 = vld [vmem:[%s0 + $0x2b0] sm:$0xff]
    %v150 = vld [vmem:[%s0 + $0x2b8] sm:$0xff]
    %v151 = vld [vmem:[%s0 + $0x2c0] sm:$0xff]
    %v152 = vld [vmem:[%s0 + $0x2c8] sm:$0xff]
    %v153 = vld [vmem:[%s0 + $0x2d0] sm:$0xff]
    %v154 = vld [vmem:[%s0 + $0x2d8] sm:$0xff]
    %v155 = vld [vmem:[%s0 + $0x2e0] sm:$0xff]
    %v156 = vld [vmem:[%s0 + $0x2e8] sm:$0xff]
    %v157 = vld [vmem:[%s0 + $0x2f0] sm:$0xff]
    %v158 = vld [vmem:[%s0 + $0x2f8] sm:$0xff]
    %v159 = vld [vmem:[%s0 + $0x300] sm:$0xff]
    %v160 = vld [vmem:[%s0 + $0x308] sm:$0xff]
    %v161 = vld [vmem:[%s0 + $0x310] sm:$0xff]
    %v162 = vld [vmem:[%s0 + $0x318] sm:$0xff]
    %v163 = vld [vmem:[%s0 + $0x320] sm:$0xff]
    %v164 = vld [vmem:[%s0 + $0x328] sm:$0xff]
    %v165 = vld [vmem:[%s0 + $0x330] sm:$0xff]
    %v166 = vld [vmem:[%s0 + $0x338] sm:$0xff]
    %v167 = vld [vmem:[%s0 + $0x340] sm:$0xff]
    %v168 = vld [vmem:[%s0 + $0x348] sm:$0xff]
    %v169 = vld [vmem:[%s0 + $0x350] sm:$0xff]
    %v170 = vld [vmem:[%s0 + $0x358] sm:$0xff]
    %v171 = vld [vmem:[%s0 + $0x360] sm:$0xff]
    %v172 = vld [vmem:[%s0 + $0x368] sm:$0xff]
    %v173 = vld [vmem:[%s0 + $0x370] sm:$0xff]
    %v174 = vld [vmem:[%s0 + $0x378] sm:$0xff]
    %v175 = vpack.c.bf16 %v70, %v63
    %v176 = vpack.c.bf16 %v71, %v64
    %v177 = vpack.c.bf16 %v72, %v65
    %v178 = vpack.c.bf16 %v73, %v66
    %v179 = vpack.c.bf16 %v74, %v67
    %v180 = vpack.c.bf16 %v75, %v68
    %v181 = vpack.c.bf16 %v76, %v69
    %v182 = vpack.c.bf16 %v84, %v77
    %v183 = vpack.c.bf16 %v85, %v78
    %v184 = vpack.c.bf16 %v86, %v79
    %v185 = vpack.c.bf16 %v87, %v80
    %v186 = vpack.c.bf16 %v88, %v81
    %v187 = vpack.c.bf16 %v89, %v82
    %v188 = vpack.c.bf16 %v90, %v83
    %v189 = vpack.c.bf16 %v98, %v91
    %v190 = vpack.c.bf16 %v99, %v92
    %v191 = vpack.c.bf16 %v100, %v93
    %v192 = vpack.c.bf16 %v101, %v94
    %v193 = vpack.c.bf16 %v102, %v95
    %v194 = vpack.c.bf16 %v103, %v96
    %v195 = vpack.c.bf16 %v104, %v97
    %v196 = vpack.c.bf16 %v112, %v105
    %v197 = vpack.c.bf16 %v113, %v106
    %v198 = vpack.c.bf16 %v114, %v107
    %v199 = vpack.c.bf16 %v115, %v108
    %v200 = vpack.c.bf16 %v116, %v109
    %v201 = vpack.c.bf16 %v117, %v110
    %v202 = vpack.c.bf16 %v118, %v111
    %v203 = vpack.c.bf16 %v126, %v119
    %v204 = vpack.c.bf16 %v127, %v120
    %v205 = vpack.c.bf16 %v128, %v121
    %v206 = vpack.c.bf16 %v129, %v122
    %v207 = vpack.c.bf16 %v130, %v123
    %v208 = vpack.c.bf16 %v131, %v124
    %v209 = vpack.c.bf16 %v132, %v125
    %v210 = vpack.c.bf16 %v140, %v133
    %v211 = vpack.c.bf16 %v141, %v134
    %v212 = vpack.c.bf16 %v142, %v135
    %v213 = vpack.c.bf16 %v143, %v136
    %v214 = vpack.c.bf16 %v144, %v137
    %v215 = vpack.c.bf16 %v145, %v138
    %v216 = vpack.c.bf16 %v146, %v139
    %v217 = vpack.c.bf16 %v154, %v147
    %v218 = vpack.c.bf16 %v155, %v148
    %v219 = vpack.c.bf16 %v156, %v149
    %v220 = vpack.c.bf16 %v157, %v150
    %v221 = vpack.c.bf16 %v158, %v151
    %v222 = vpack.c.bf16 %v159, %v152
    %v223 = vpack.c.bf16 %v160, %v153
    %v224 = vpack.c.bf16 %v168, %v161
    %v225 = vpack.c.bf16 %v169, %v162
    %v226 = vpack.c.bf16 %v170, %v163
    %v227 = vpack.c.bf16 %v171, %v164
    %v228 = vpack.c.bf16 %v172, %v165
    %v229 = vpack.c.bf16 %v173, %v166
    %v230 = vpack.c.bf16 %v174, %v167
    %v231 = vld [vmem:[%s1] sm:$0xff]
    %v232 = vld [vmem:[%s1 + $0x8] sm:$0xff]
    %v233 = vld [vmem:[%s1 + $0x10] sm:$0xff]
    %v234 = vld [vmem:[%s1 + $0x18] sm:$0xff]
    %v235 = vld [vmem:[%s1 + $0x20] sm:$0xff]
    %v236 = vld [vmem:[%s1 + $0x28] sm:$0xff]
    %v237 = vld [vmem:[%s1 + $0x30] sm:$0xff]
    %v238 = vld [vmem:[%s1 + $0x38] sm:$0xff]
    %v239 = vld [vmem:[%s1 + $0x40] sm:$0xff]
    %v240 = vld [vmem:[%s1 + $0x48] sm:$0xff]
    %v241 = vld [vmem:[%s1 + $0x50] sm:$0xff]
    %v242 = vld [vmem:[%s1 + $0x58] sm:$0xff]
    %v243 = vld [vmem:[%s1 + $0x60] sm:$0xff]
    %v244 = vld [vmem:[%s1 + $0x68] sm:$0xff]
    %v245 = vld [vmem:[%s1 + $0x70] sm:$0xff]
    %v246 = vld [vmem:[%s1 + $0x78] sm:$0xff]
    %v247 = vld [vmem:[%s1 + $0x80] sm:$0xff]
    %v248 = vld [vmem:[%s1 + $0x88] sm:$0xff]
    %v249 = vld [vmem:[%s1 + $0x90] sm:$0xff]
    %v250 = vld [vmem:[%s1 + $0x98] sm:$0xff]
    %v251 = vld [vmem:[%s1 + $0xa0] sm:$0xff]
    %v252 = vld [vmem:[%s1 + $0xa8] sm:$0xff]
    %v253 = vld [vmem:[%s1 + $0xb0] sm:$0xff]
    %v254 = vld [vmem:[%s1 + $0xb8] sm:$0xff]
    %v255 = vld [vmem:[%s1 + $0xc0] sm:$0xff]
    %v256 = vld [vmem:[%s1 + $0xc8] sm:$0xff]
    %v257 = vld [vmem:[%s1 + $0xd0] sm:$0xff]
    %v258 = vld [vmem:[%s1 + $0xd8] sm:$0xff]
    %v259 = vld [vmem:[%s1 + $0xe0] sm:$0xff]
    %v260 = vld [vmem:[%s1 + $0xe8] sm:$0xff]
    %v261 = vld [vmem:[%s1 + $0xf0] sm:$0xff]
    %v262 = vld [vmem:[%s1 + $0xf8] sm:$0xff]
    %v263 = vld [vmem:[%s1 + $0x100] sm:$0xff]
    %v264 = vld [vmem:[%s1 + $0x108] sm:$0xff]
    %v265 = vld [vmem:[%s1 + $0x110] sm:$0xff]
    %v266 = vld [vmem:[%s1 + $0x118] sm:$0xff]
    %v267 = vld [vmem:[%s1 + $0x120] sm:$0xff]
    %v268 = vld [vmem:[%s1 + $0x128] sm:$0xff]
    %v269 = vld [vmem:[%s1 + $0x130] sm:$0xff]
    %v270 = vld [vmem:[%s1 + $0x138] sm:$0xff]
    %v271 = vld [vmem:[%s1 + $0x140] sm:$0xff]
    %v272 = vld [vmem:[%s1 + $0x148] sm:$0xff]
    %v273 = vld [vmem:[%s1 + $0x150] sm:$0xff]
    %v274 = vld [vmem:[%s1 + $0x158] sm:$0xff]
    %v275 = vld [vmem:[%s1 + $0x160] sm:$0xff]
    %v276 = vld [vmem:[%s1 + $0x168] sm:$0xff]
    %v277 = vld [vmem:[%s1 + $0x170] sm:$0xff]
    %v278 = vld [vmem:[%s1 + $0x178] sm:$0xff]
    %v279 = vld [vmem:[%s1 + $0x180] sm:$0xff]
    %v280 = vld [vmem:[%s1 + $0x188] sm:$0xff]
    %v281 = vld [vmem:[%s1 + $0x190] sm:$0xff]
    %v282 = vld [vmem:[%s1 + $0x198] sm:$0xff]
    %v283 = vld [vmem:[%s1 + $0x1a0] sm:$0xff]
    %v284 = vld [vmem:[%s1 + $0x1a8] sm:$0xff]
    %v285 = vld [vmem:[%s1 + $0x1b0] sm:$0xff]
    %v286 = vld [vmem:[%s1 + $0x1b8] sm:$0xff]
    %v287 = vld [vmem:[%s1 + $0x1c0] sm:$0xff]
    %v288 = vld [vmem:[%s1 + $0x1c8] sm:$0xff]
    %v289 = vld [vmem:[%s1 + $0x1d0] sm:$0xff]
    %v290 = vld [vmem:[%s1 + $0x1d8] sm:$0xff]
    %v291 = vld [vmem:[%s1 + $0x1e0] sm:$0xff]
    %v292 = vld [vmem:[%s1 + $0x1e8] sm:$0xff]
    %v293 = vld [vmem:[%s1 + $0x1f0] sm:$0xff]
    %v294 = vld [vmem:[%s1 + $0x1f8] sm:$0xff]
    %v295 = vld [vmem:[%s1 + $0x200] sm:$0xff]
    %v296 = vld [vmem:[%s1 + $0x208] sm:$0xff]
    %v297 = vld [vmem:[%s1 + $0x210] sm:$0xff]
    %v298 = vld [vmem:[%s1 + $0x218] sm:$0xff]
    %v299 = vld [vmem:[%s1 + $0x220] sm:$0xff]
    %v300 = vld [vmem:[%s1 + $0x228] sm:$0xff]
    %v301 = vld [vmem:[%s1 + $0x230] sm:$0xff]
    %v302 = vld [vmem:[%s1 + $0x238] sm:$0xff]
    %v303 = vld [vmem:[%s1 + $0x240] sm:$0xff]
    %v304 = vld [vmem:[%s1 + $0x248] sm:$0xff]
    %v305 = vld [vmem:[%s1 + $0x250] sm:$0xff]
    %v306 = vld [vmem:[%s1 + $0x258] sm:$0xff]
    %v307 = vld [vmem:[%s1 + $0x260] sm:$0xff]
    %v308 = vld [vmem:[%s1 + $0x268] sm:$0xff]
    %v309 = vld [vmem:[%s1 + $0x270] sm:$0xff]
    %v310 = vld [vmem:[%s1 + $0x278] sm:$0xff]
    %v311 = vld [vmem:[%s1 + $0x280] sm:$0xff]
    %v312 = vld [vmem:[%s1 + $0x288] sm:$0xff]
    %v313 = vld [vmem:[%s1 + $0x290] sm:$0xff]
    %v314 = vld [vmem:[%s1 + $0x298] sm:$0xff]
    %v315 = vld [vmem:[%s1 + $0x2a0] sm:$0xff]
    %v316 = vld [vmem:[%s1 + $0x2a8] sm:$0xff]
    %v317 = vld [vmem:[%s1 + $0x2b0] sm:$0xff]
    %v318 = vld [vmem:[%s1 + $0x2b8] sm:$0xff]
    %v319 = vld [vmem:[%s1 + $0x2c0] sm:$0xff]
    %v320 = vld [vmem:[%s1 + $0x2c8] sm:$0xff]
    %v321 = vld [vmem:[%s1 + $0x2d0] sm:$0xff]
    %v322 = vld [vmem:[%s1 + $0x2d8] sm:$0xff]
    %v323 = vld [vmem:[%s1 + $0x2e0] sm:$0xff]
    %v324 = vld [vmem:[%s1 + $0x2e8] sm:$0xff]
    %v325 = vld [vmem:[%s1 + $0x2f0] sm:$0xff]
    %v326 = vld [vmem:[%s1 + $0x2f8] sm:$0xff]
    %v327 = vld [vmem:[%s1 + $0x300] sm:$0xff]
    %v328 = vld [vmem:[%s1 + $0x308] sm:$0xff]
    %v330 = vperm.slane %v60, 0
    %v331 = vperm.slane %v60, 1
    %v432 = vunpack.c.l.b16 %v231
    %v433 = vunpack.c.h.b16 %v231
    %v434 = vunpack.c.l.b16 %v232
    %v435 = vunpack.c.h.b16 %v232
    %v436 = vunpack.c.l.b16 %v233
    %v437 = vunpack.c.h.b16 %v233
    %v438 = vunpack.c.l.b16 %v234
    %v439 = vunpack.c.h.b16 %v234
    %v440 = vunpack.c.l.b16 %v235
    %v441 = vunpack.c.h.b16 %v235
    %v442 = vunpack.c.l.b16 %v236
    %v443 = vunpack.c.h.b16 %v236
    %v444 = vunpack.c.l.b16 %v237
    %v445 = vunpack.c.h.b16 %v237
    %v446 = vunpack.c.l.b16 %v238
    %v447 = vunpack.c.h.b16 %v238
    %v448 = vunpack.c.l.b16 %v239
    %v449 = vunpack.c.h.b16 %v239
    %v450 = vunpack.c.l.b16 %v240
    %v451 = vunpack.c.h.b16 %v240
    %v452 = vunpack.c.l.b16 %v241
    %v453 = vunpack.c.h.b16 %v241
    %v454 = vunpack.c.l.b16 %v242
    %v455 = vunpack.c.h.b16 %v242
    %v456 = vunpack.c.l.b16 %v243
    %v457 = vunpack.c.h.b16 %v243
    %v458 = vunpack.c.l.b16 %v244
    %v459 = vunpack.c.h.b16 %v244
    %v460 = vunpack.c.l.b16 %v245
    %v461 = vunpack.c.h.b16 %v245
    %v462 = vunpack.c.l.b16 %v246
    %v463 = vunpack.c.h.b16 %v246
    %v464 = vunpack.c.l.b16 %v247
    %v465 = vunpack.c.h.b16 %v247
    %v466 = vunpack.c.l.b16 %v248
    %v467 = vunpack.c.h.b16 %v248
    %v468 = vunpack.c.l.b16 %v249
    %v469 = vunpack.c.h.b16 %v249
    %v470 = vunpack.c.l.b16 %v250
    %v471 = vunpack.c.h.b16 %v250
    %v472 = vunpack.c.l.b16 %v251
    %v473 = vunpack.c.h.b16 %v251
    %v474 = vunpack.c.l.b16 %v252
    %v475 = vunpack.c.h.b16 %v252
    %v476 = vunpack.c.l.b16 %v253
    %v477 = vunpack.c.h.b16 %v253
    %v478 = vunpack.c.l.b16 %v254
    %v479 = vunpack.c.h.b16 %v254
    %v480 = vunpack.c.l.b16 %v255
    %v481 = vunpack.c.h.b16 %v255
    %v482 = vunpack.c.l.b16 %v256
    %v483 = vunpack.c.h.b16 %v256
    %v484 = vunpack.c.l.b16 %v257
    %v485 = vunpack.c.h.b16 %v257
    %v486 = vunpack.c.l.b16 %v258
    %v487 = vunpack.c.h.b16 %v258
    %v488 = vunpack.c.l.b16 %v259
    %v489 = vunpack.c.h.b16 %v259
    %v490 = vunpack.c.l.b16 %v260
    %v491 = vunpack.c.h.b16 %v260
    %v492 = vunpack.c.l.b16 %v261
    %v493 = vunpack.c.h.b16 %v261
    %v494 = vunpack.c.l.b16 %v262
    %v495 = vunpack.c.h.b16 %v262
    %v496 = vunpack.c.l.b16 %v263
    %v497 = vunpack.c.h.b16 %v263
    %v498 = vunpack.c.l.b16 %v264
    %v499 = vunpack.c.h.b16 %v264
    %v500 = vunpack.c.l.b16 %v265
    %v501 = vunpack.c.h.b16 %v265
    %v502 = vunpack.c.l.b16 %v266
    %v503 = vunpack.c.h.b16 %v266
    %v504 = vunpack.c.l.b16 %v267
    %v505 = vunpack.c.h.b16 %v267
    %v506 = vunpack.c.l.b16 %v268
    %v507 = vunpack.c.h.b16 %v268
    %v508 = vunpack.c.l.b16 %v269
    %v509 = vunpack.c.h.b16 %v269
    %v510 = vunpack.c.l.b16 %v270
    %v511 = vunpack.c.h.b16 %v270
    %v512 = vunpack.c.l.b16 %v271
    %v513 = vunpack.c.h.b16 %v271
    %v514 = vunpack.c.l.b16 %v272
    %v515 = vunpack.c.h.b16 %v272
    %v516 = vunpack.c.l.b16 %v273
    %v517 = vunpack.c.h.b16 %v273
    %v518 = vunpack.c.l.b16 %v274
    %v519 = vunpack.c.h.b16 %v274
    %v520 = vunpack.c.l.b16 %v275
    %v521 = vunpack.c.h.b16 %v275
    %v522 = vunpack.c.l.b16 %v276
    %v523 = vunpack.c.h.b16 %v276
    %v524 = vunpack.c.l.b16 %v277
    %v525 = vunpack.c.h.b16 %v277
    %v526 = vunpack.c.l.b16 %v278
    %v527 = vunpack.c.h.b16 %v278
    %v528 = vunpack.c.l.b16 %v279
    %v529 = vunpack.c.h.b16 %v279
    %v530 = vunpack.c.l.b16 %v280
    %v531 = vunpack.c.h.b16 %v280
    %v532 = vunpack.c.l.b16 %v281
    %v533 = vunpack.c.h.b16 %v281
    %v534 = vunpack.c.l.b16 %v282
    %v535 = vunpack.c.h.b16 %v282
    %v536 = vunpack.c.l.b16 %v283
    %v537 = vunpack.c.h.b16 %v283
    %v538 = vunpack.c.l.b16 %v284
    %v539 = vunpack.c.h.b16 %v284
    %v540 = vunpack.c.l.b16 %v285
    %v541 = vunpack.c.h.b16 %v285
    %v542 = vunpack.c.l.b16 %v286
    %v543 = vunpack.c.h.b16 %v286
    %v544 = vunpack.c.l.b16 %v287
    %v545 = vunpack.c.h.b16 %v287
    %v546 = vunpack.c.l.b16 %v288
    %v547 = vunpack.c.h.b16 %v288
    %v548 = vunpack.c.l.b16 %v289
    %v549 = vunpack.c.h.b16 %v289
    %v550 = vunpack.c.l.b16 %v290
    %v551 = vunpack.c.h.b16 %v290
    %v552 = vunpack.c.l.b16 %v291
    %v553 = vunpack.c.h.b16 %v291
    %v554 = vunpack.c.l.b16 %v292
    %v555 = vunpack.c.h.b16 %v292
    %v556 = vunpack.c.l.b16 %v293
    %v557 = vunpack.c.h.b16 %v293
    %v558 = vunpack.c.l.b16 %v294
    %v559 = vunpack.c.h.b16 %v294
    %v560 = vunpack.c.l.b16 %v295
    %v561 = vunpack.c.h.b16 %v295
    %v562 = vunpack.c.l.b16 %v296
    %v563 = vunpack.c.h.b16 %v296
    %v564 = vunpack.c.l.b16 %v297
    %v565 = vunpack.c.h.b16 %v297
    %v566 = vunpack.c.l.b16 %v298
    %v567 = vunpack.c.h.b16 %v298
    %v568 = vunpack.c.l.b16 %v299
    %v569 = vunpack.c.h.b16 %v299
    %v570 = vunpack.c.l.b16 %v300
    %v571 = vunpack.c.h.b16 %v300
    %v572 = vunpack.c.l.b16 %v301
    %v573 = vunpack.c.h.b16 %v301
    %v574 = vunpack.c.l.b16 %v302
    %v575 = vunpack.c.h.b16 %v302
    %v576 = vunpack.c.l.b16 %v303
    %v577 = vunpack.c.h.b16 %v303
    %v578 = vunpack.c.l.b16 %v304
    %v579 = vunpack.c.h.b16 %v304
    %v580 = vunpack.c.l.b16 %v305
    %v581 = vunpack.c.h.b16 %v305
    %v582 = vunpack.c.l.b16 %v306
    %v583 = vunpack.c.h.b16 %v306
    %v584 = vunpack.c.l.b16 %v307
    %v585 = vunpack.c.h.b16 %v307
    %v586 = vunpack.c.l.b16 %v308
    %v587 = vunpack.c.h.b16 %v308
    %v588 = vunpack.c.l.b16 %v309
    %v589 = vunpack.c.h.b16 %v309
    %v590 = vunpack.c.l.b16 %v310
    %v591 = vunpack.c.h.b16 %v310
    %v592 = vunpack.c.l.b16 %v311
    %v593 = vunpack.c.h.b16 %v311
    %v594 = vunpack.c.l.b16 %v312
    %v595 = vunpack.c.h.b16 %v312
    %v596 = vunpack.c.l.b16 %v313
    %v597 = vunpack.c.h.b16 %v313
    %v598 = vunpack.c.l.b16 %v314
    %v599 = vunpack.c.h.b16 %v314
    %v600 = vunpack.c.l.b16 %v315
    %v601 = vunpack.c.h.b16 %v315
    %v602 = vunpack.c.l.b16 %v316
    %v603 = vunpack.c.h.b16 %v316
    %v604 = vunpack.c.l.b16 %v317
    %v605 = vunpack.c.h.b16 %v317
    %v606 = vunpack.c.l.b16 %v318
    %v607 = vunpack.c.h.b16 %v318
    %v608 = vunpack.c.l.b16 %v319
    %v609 = vunpack.c.h.b16 %v319
    %v610 = vunpack.c.l.b16 %v320
    %v611 = vunpack.c.h.b16 %v320
    %v612 = vunpack.c.l.b16 %v321
    %v613 = vunpack.c.h.b16 %v321
    %v614 = vunpack.c.l.b16 %v322
    %v615 = vunpack.c.h.b16 %v322
    %v616 = vunpack.c.l.b16 %v323
    %v617 = vunpack.c.h.b16 %v323
    %v618 = vunpack.c.l.b16 %v324
    %v619 = vunpack.c.h.b16 %v324
    %v620 = vunpack.c.l.b16 %v325
    %v621 = vunpack.c.h.b16 %v325
    %v622 = vunpack.c.l.b16 %v326
    %v623 = vunpack.c.h.b16 %v326
    %v624 = vunpack.c.l.b16 %v327
    %v625 = vunpack.c.h.b16 %v327
    %v626 = vunpack.c.l.b16 %v328
    %v627 = vunpack.c.h.b16 %v328
    %v628 = vpack.c.b16 %v434, %v432
    %v629 = vpack.c.b16 %v435, %v433
    %v630 = vpack.c.b16 %v438, %v436
    %v631 = vpack.c.b16 %v439, %v437
    %v632 = vpack.c.b16 %v442, %v440
    %v633 = vpack.c.b16 %v443, %v441
    %v634 = vpack.c.b16 %v446, %v444
    %v635 = vpack.c.b16 %v447, %v445
    %v636 = vpack.c.b16 %v450, %v448
    %v637 = vpack.c.b16 %v451, %v449
    %v638 = vpack.c.b16 %v454, %v452
    %v639 = vpack.c.b16 %v455, %v453
    %v640 = vpack.c.b16 %v458, %v456
    %v641 = vpack.c.b16 %v459, %v457
    %v642 = vpack.c.b16 %v462, %v460
    %v643 = vpack.c.b16 %v463, %v461
    %v644 = vpack.c.b16 %v466, %v464
    %v645 = vpack.c.b16 %v467, %v465
    %v646 = vpack.c.b16 %v470, %v468
    %v647 = vpack.c.b16 %v471, %v469
    %v648 = vpack.c.b16 %v474, %v472
    %v649 = vpack.c.b16 %v475, %v473
    %v650 = vpack.c.b16 %v478, %v476
    %v651 = vpack.c.b16 %v479, %v477
    %v652 = vpack.c.b16 %v482, %v480
    %v653 = vpack.c.b16 %v483, %v481
    %v654 = vpack.c.b16 %v486, %v484
    %v655 = vpack.c.b16 %v487, %v485
    %v656 = vpack.c.b16 %v490, %v488
    %v657 = vpack.c.b16 %v491, %v489
    %v658 = vpack.c.b16 %v494, %v492
    %v659 = vpack.c.b16 %v495, %v493
    %v660 = vpack.c.b16 %v498, %v496
    %v661 = vpack.c.b16 %v499, %v497
    %v662 = vpack.c.b16 %v502, %v500
    %v663 = vpack.c.b16 %v503, %v501
    %v664 = vpack.c.b16 %v506, %v504
    %v665 = vpack.c.b16 %v507, %v505
    %v666 = vpack.c.b16 %v510, %v508
    %v667 = vpack.c.b16 %v511, %v509
    %v668 = vpack.c.b16 %v514, %v512
    %v669 = vpack.c.b16 %v515, %v513
    %v670 = vpack.c.b16 %v518, %v516
    %v671 = vpack.c.b16 %v519, %v517
    %v672 = vpack.c.b16 %v522, %v520
    %v673 = vpack.c.b16 %v523, %v521
    %v674 = vpack.c.b16 %v526, %v524
    %v675 = vpack.c.b16 %v527, %v525
    %v676 = vpack.c.b16 %v530, %v528
    %v677 = vpack.c.b16 %v531, %v529
    %v678 = vpack.c.b16 %v534, %v532
    %v679 = vpack.c.b16 %v535, %v533
    %v680 = vpack.c.b16 %v538, %v536
    %v681 = vpack.c.b16 %v539, %v537
    %v682 = vpack.c.b16 %v542, %v540
    %v683 = vpack.c.b16 %v543, %v541
    %v684 = vpack.c.b16 %v546, %v544
    %v685 = vpack.c.b16 %v547, %v545
    %v686 = vpack.c.b16 %v550, %v548
    %v687 = vpack.c.b16 %v551, %v549
    %v688 = vpack.c.b16 %v554, %v552
    %v689 = vpack.c.b16 %v555, %v553
    %v690 = vpack.c.b16 %v558, %v556
    %v691 = vpack.c.b16 %v559, %v557
    %v692 = vpack.c.b16 %v562, %v560
    %v693 = vpack.c.b16 %v563, %v561
    %v694 = vpack.c.b16 %v566, %v564
    %v695 = vpack.c.b16 %v567, %v565
    %v696 = vpack.c.b16 %v570, %v568
    %v697 = vpack.c.b16 %v571, %v569
    %v698 = vpack.c.b16 %v574, %v572
    %v699 = vpack.c.b16 %v575, %v573
    %v700 = vpack.c.b16 %v578, %v576
    %v701 = vpack.c.b16 %v579, %v577
    %v702 = vpack.c.b16 %v582, %v580
    %v703 = vpack.c.b16 %v583, %v581
    %v704 = vpack.c.b16 %v586, %v584
    %v705 = vpack.c.b16 %v587, %v585
    %v706 = vpack.c.b16 %v590, %v588
    %v707 = vpack.c.b16 %v591, %v589
    %v708 = vpack.c.b16 %v594, %v592
    %v709 = vpack.c.b16 %v595, %v593
    %v710 = vpack.c.b16 %v598, %v596
    %v711 = vpack.c.b16 %v599, %v597
    %v712 = vpack.c.b16 %v602, %v600
    %v713 = vpack.c.b16 %v603, %v601
    %v714 = vpack.c.b16 %v606, %v604
    %v715 = vpack.c.b16 %v607, %v605
    %v716 = vpack.c.b16 %v610, %v608
    %v717 = vpack.c.b16 %v611, %v609
    %v718 = vpack.c.b16 %v614, %v612
    %v719 = vpack.c.b16 %v615, %v613
    %v720 = vpack.c.b16 %v618, %v616
    %v721 = vpack.c.b16 %v619, %v617
    %v722 = vpack.c.b16 %v622, %v620
    %v723 = vpack.c.b16 %v623, %v621
    %v724 = vpack.c.b16 %v626, %v624
    %v725 = vpack.c.b16 %v627, %v625
    %vm824 = vcmask 130048
    %v826 = vsel %vm824, %v181, 0
    %v829 = vsel %vm824, %v188, 0
    %v832 = vsel %vm824, %v195, 0
    %v835 = vsel %vm824, %v202, 0
    %v838 = vsel %vm824, %v209, 0
    %v841 = vsel %vm824, %v216, 0
    %v844 = vsel %vm824, %v223, 0
    %v847 = vsel %vm824, %v230, 0
    %849 = vmatpush.bf16.msra.mxu0 %v642
    %850 = vmatpush.bf16.msra.mxu0 %v640
    %851 = vmatpush.bf16.msra.mxu0 %v638
    %852 = vmatpush.bf16.msra.mxu0 %v636
    %853 = vmatpush.bf16.msra.mxu0 %v634
    %854 = vmatpush.bf16.msra.mxu0 %v632
    %855 = vmatpush.bf16.msra.mxu0 %v630
    %856 = vmatpush.bf16.msra.mxu0 %v628
    %857 = vmatmul.bf16.gmra.mxu0 %v175
    %v858 = vpop.f32.mrf.mxu0
    %v859 = vadd.f32 %v330, %v858
    %v860 = vpop.f32.mrf.mxu0
    %v861 = vadd.f32 %v330, %v860
    %862 = vmatmul.bf16.gmra.mxu0 %v182
    %v863 = vpop.f32.mrf.mxu0
    %v864 = vadd.f32 %v330, %v863
    %v865 = vpop.f32.mrf.mxu0
    %v866 = vadd.f32 %v330, %v865
    %867 = vmatmul.bf16.gmra.mxu0 %v189
    %v868 = vpop.f32.mrf.mxu0
    %v869 = vadd.f32 %v330, %v868
    %v870 = vpop.f32.mrf.mxu0
    %v871 = vadd.f32 %v330, %v870
    %872 = vmatmul.bf16.gmra.mxu0 %v196
    %v873 = vpop.f32.mrf.mxu0
    %v874 = vadd.f32 %v330, %v873
    %v875 = vpop.f32.mrf.mxu0
    %v876 = vadd.f32 %v330, %v875
    %877 = vmatmul.bf16.gmra.mxu0 %v203
    %v878 = vpop.f32.mrf.mxu0
    %v879 = vadd.f32 %v330, %v878
    %v880 = vpop.f32.mrf.mxu0
    %v881 = vadd.f32 %v330, %v880
    %882 = vmatmul.bf16.gmra.mxu0 %v210
    %v883 = vpop.f32.mrf.mxu0
    %v884 = vadd.f32 %v330, %v883
    %v885 = vpop.f32.mrf.mxu0
    %v886 = vadd.f32 %v330, %v885
    %887 = vmatmul.bf16.gmra.mxu0 %v217
    %v888 = vpop.f32.mrf.mxu0
    %v889 = vadd.f32 %v330, %v888
    %v890 = vpop.f32.mrf.mxu0
    %v891 = vadd.f32 %v330, %v890
    %892 = vmatmul.bf16.gmra.mxu0 %v224
    %v893 = vpop.f32.mrf.mxu0
    %v894 = vadd.f32 %v330, %v893
    %v895 = vpop.f32.mrf.mxu0
    %v896 = vadd.f32 %v330, %v895
    %897 = vdwg.mxu0
    %898 = vmatpush.bf16.msra.mxu0 %v658
    %899 = vmatpush.bf16.msra.mxu0 %v656
    %900 = vmatpush.bf16.msra.mxu0 %v654
    %901 = vmatpush.bf16.msra.mxu0 %v652
    %902 = vmatpush.bf16.msra.mxu0 %v650
    %903 = vmatpush.bf16.msra.mxu0 %v648
    %904 = vmatpush.bf16.msra.mxu0 %v646
    %905 = vmatpush.bf16.msra.mxu0 %v644
    %906 = vmatmul.bf16.gmra.mxu0 %v176
    %v907 = vpop.f32.mrf.mxu0
    %v908 = vadd.f32 %v859, %v907
    %v909 = vpop.f32.mrf.mxu0
    %v910 = vadd.f32 %v861, %v909
    %911 = vmatmul.bf16.gmra.mxu0 %v183
    %v912 = vpop.f32.mrf.mxu0
    %v913 = vadd.f32 %v864, %v912
    %v914 = vpop.f32.mrf.mxu0
    %v915 = vadd.f32 %v866, %v914
    %916 = vmatmul.bf16.gmra.mxu0 %v190
    %v917 = vpop.f32.mrf.mxu0
    %v918 = vadd.f32 %v869, %v917
    %v919 = vpop.f32.mrf.mxu0
    %v920 = vadd.f32 %v871, %v919
    %921 = vmatmul.bf16.gmra.mxu0 %v197
    %v922 = vpop.f32.mrf.mxu0
    %v923 = vadd.f32 %v874, %v922
    %v924 = vpop.f32.mrf.mxu0
    %v925 = vadd.f32 %v876, %v924
    %926 = vmatmul.bf16.gmra.mxu0 %v204
    %v927 = vpop.f32.mrf.mxu0
    %v928 = vadd.f32 %v879, %v927
    %v929 = vpop.f32.mrf.mxu0
    %v930 = vadd.f32 %v881, %v929
    %931 = vmatmul.bf16.gmra.mxu0 %v211
    %v932 = vpop.f32.mrf.mxu0
    %v933 = vadd.f32 %v884, %v932
    %v934 = vpop.f32.mrf.mxu0
    %v935 = vadd.f32 %v886, %v934
    %936 = vmatmul.bf16.gmra.mxu0 %v218
    %v937 = vpop.f32.mrf.mxu0
    %v938 = vadd.f32 %v889, %v937
    %v939 = vpop.f32.mrf.mxu0
    %v940 = vadd.f32 %v891, %v939
    %941 = vmatmul.bf16.gmra.mxu0 %v225
    %v942 = vpop.f32.mrf.mxu0
    %v943 = vadd.f32 %v894, %v942
    %v944 = vpop.f32.mrf.mxu0
    %v945 = vadd.f32 %v896, %v944
    %946 = vdwg.mxu0
    %947 = vmatpush.bf16.msra.mxu0 %v674
    %948 = vmatpush.bf16.msra.mxu0 %v672
    %949 = vmatpush.bf16.msra.mxu0 %v670
    %950 = vmatpush.bf16.msra.mxu0 %v668
    %951 = vmatpush.bf16.msra.mxu0 %v666
    %952 = vmatpush.bf16.msra.mxu0 %v664
    %953 = vmatpush.bf16.msra.mxu0 %v662
    %954 = vmatpush.bf16.msra.mxu0 %v660
    %955 = vmatmul.bf16.gmra.mxu0 %v177
    %v956 = vpop.f32.mrf.mxu0
    %v957 = vadd.f32 %v908, %v956
    %v958 = vpop.f32.mrf.mxu0
    %v959 = vadd.f32 %v910, %v958
    %960 = vmatmul.bf16.gmra.mxu0 %v184
    %v961 = vpop.f32.mrf.mxu0
    %v962 = vadd.f32 %v913, %v961
    %v963 = vpop.f32.mrf.mxu0
    %v964 = vadd.f32 %v915, %v963
    %965 = vmatmul.bf16.gmra.mxu0 %v191
    %v966 = vpop.f32.mrf.mxu0
    %v967 = vadd.f32 %v918, %v966
    %v968 = vpop.f32.mrf.mxu0
    %v969 = vadd.f32 %v920, %v968
    %970 = vmatmul.bf16.gmra.mxu0 %v198
    %v971 = vpop.f32.mrf.mxu0
    %v972 = vadd.f32 %v923, %v971
    %v973 = vpop.f32.mrf.mxu0
    %v974 = vadd.f32 %v925, %v973
    %975 = vmatmul.bf16.gmra.mxu0 %v205
    %v976 = vpop.f32.mrf.mxu0
    %v977 = vadd.f32 %v928, %v976
    %v978 = vpop.f32.mrf.mxu0
    %v979 = vadd.f32 %v930, %v978
    %980 = vmatmul.bf16.gmra.mxu0 %v212
    %v981 = vpop.f32.mrf.mxu0
    %v982 = vadd.f32 %v933, %v981
    %v983 = vpop.f32.mrf.mxu0
    %v984 = vadd.f32 %v935, %v983
    %985 = vmatmul.bf16.gmra.mxu0 %v219
    %v986 = vpop.f32.mrf.mxu0
    %v987 = vadd.f32 %v938, %v986
    %v988 = vpop.f32.mrf.mxu0
    %v989 = vadd.f32 %v940, %v988
    %990 = vmatmul.bf16.gmra.mxu0 %v226
    %v991 = vpop.f32.mrf.mxu0
    %v992 = vadd.f32 %v943, %v991
    %v993 = vpop.f32.mrf.mxu0
    %v994 = vadd.f32 %v945, %v993
    %995 = vdwg.mxu0
    %996 = vmatpush.bf16.msra.mxu0 %v690
    %997 = vmatpush.bf16.msra.mxu0 %v688
    %998 = vmatpush.bf16.msra.mxu0 %v686
    %999 = vmatpush.bf16.msra.mxu0 %v684
    %1000 = vmatpush.bf16.msra.mxu0 %v682
    %1001 = vmatpush.bf16.msra.mxu0 %v680
    %1002 = vmatpush.bf16.msra.mxu0 %v678
    %1003 = vmatpush.bf16.msra.mxu0 %v676
    %1004 = vmatmul.bf16.gmra.mxu0 %v178
    %v1005 = vpop.f32.mrf.mxu0
    %v1006 = vadd.f32 %v957, %v1005
    %v1007 = vpop.f32.mrf.mxu0
    %v1008 = vadd.f32 %v959, %v1007
    %1009 = vmatmul.bf16.gmra.mxu0 %v185
    %v1010 = vpop.f32.mrf.mxu0
    %v1011 = vadd.f32 %v962, %v1010
    %v1012 = vpop.f32.mrf.mxu0
    %v1013 = vadd.f32 %v964, %v1012
    %1014 = vmatmul.bf16.gmra.mxu0 %v192
    %v1015 = vpop.f32.mrf.mxu0
    %v1016 = vadd.f32 %v967, %v1015
    %v1017 = vpop.f32.mrf.mxu0
    %v1018 = vadd.f32 %v969, %v1017
    %1019 = vmatmul.bf16.gmra.mxu0 %v199
    %v1020 = vpop.f32.mrf.mxu0
    %v1021 = vadd.f32 %v972, %v1020
    %v1022 = vpop.f32.mrf.mxu0
    %v1023 = vadd.f32 %v974, %v1022
    %1024 = vmatmul.bf16.gmra.mxu0 %v206
    %v1025 = vpop.f32.mrf.mxu0
    %v1026 = vadd.f32 %v977, %v1025
    %v1027 = vpop.f32.mrf.mxu0
    %v1028 = vadd.f32 %v979, %v1027
    %1029 = vmatmul.bf16.gmra.mxu0 %v213
    %v1030 = vpop.f32.mrf.mxu0
    %v1031 = vadd.f32 %v982, %v1030
    %v1032 = vpop.f32.mrf.mxu0
    %v1033 = vadd.f32 %v984, %v1032
    %1034 = vmatmul.bf16.gmra.mxu0 %v220
    %v1035 = vpop.f32.mrf.mxu0
    %v1036 = vadd.f32 %v987, %v1035
    %v1037 = vpop.f32.mrf.mxu0
    %v1038 = vadd.f32 %v989, %v1037
    %1039 = vmatmul.bf16.gmra.mxu0 %v227
    %v1040 = vpop.f32.mrf.mxu0
    %v1041 = vadd.f32 %v992, %v1040
    %v1042 = vpop.f32.mrf.mxu0
    %v1043 = vadd.f32 %v994, %v1042
    %1044 = vdwg.mxu0
    %1045 = vmatpush.bf16.msra.mxu0 %v706
    %1046 = vmatpush.bf16.msra.mxu0 %v704
    %1047 = vmatpush.bf16.msra.mxu0 %v702
    %1048 = vmatpush.bf16.msra.mxu0 %v700
    %1049 = vmatpush.bf16.msra.mxu0 %v698
    %1050 = vmatpush.bf16.msra.mxu0 %v696
    %1051 = vmatpush.bf16.msra.mxu0 %v694
    %1052 = vmatpush.bf16.msra.mxu0 %v692
    %1053 = vmatmul.bf16.gmra.mxu0 %v179
    %v1054 = vpop.f32.mrf.mxu0
    %v1055 = vadd.f32 %v1006, %v1054
    %v1056 = vpop.f32.mrf.mxu0
    %v1057 = vadd.f32 %v1008, %v1056
    %1058 = vmatmul.bf16.gmra.mxu0 %v186
    %v1059 = vpop.f32.mrf.mxu0
    %v1060 = vadd.f32 %v1011, %v1059
    %v1061 = vpop.f32.mrf.mxu0
    %v1062 = vadd.f32 %v1013, %v1061
    %1063 = vmatmul.bf16.gmra.mxu0 %v193
    %v1064 = vpop.f32.mrf.mxu0
    %v1065 = vadd.f32 %v1016, %v1064
    %v1066 = vpop.f32.mrf.mxu0
    %v1067 = vadd.f32 %v1018, %v1066
    %1068 = vmatmul.bf16.gmra.mxu0 %v200
    %v1069 = vpop.f32.mrf.mxu0
    %v1070 = vadd.f32 %v1021, %v1069
    %v1071 = vpop.f32.mrf.mxu0
    %v1072 = vadd.f32 %v1023, %v1071
    %1073 = vmatmul.bf16.gmra.mxu0 %v207
    %v1074 = vpop.f32.mrf.mxu0
    %v1075 = vadd.f32 %v1026, %v1074
    %v1076 = vpop.f32.mrf.mxu0
    %v1077 = vadd.f32 %v1028, %v1076
    %1078 = vmatmul.bf16.gmra.mxu0 %v214
    %v1079 = vpop.f32.mrf.mxu0
    %v1080 = vadd.f32 %v1031, %v1079
    %v1081 = vpop.f32.mrf.mxu0
    %v1082 = vadd.f32 %v1033, %v1081
    %1083 = vmatmul.bf16.gmra.mxu0 %v221
    %v1084 = vpop.f32.mrf.mxu0
    %v1085 = vadd.f32 %v1036, %v1084
    %v1086 = vpop.f32.mrf.mxu0
    %v1087 = vadd.f32 %v1038, %v1086
    %1088 = vmatmul.bf16.gmra.mxu0 %v228
    %v1089 = vpop.f32.mrf.mxu0
    %v1090 = vadd.f32 %v1041, %v1089
    %v1091 = vpop.f32.mrf.mxu0
    %v1092 = vadd.f32 %v1043, %v1091
    %1093 = vdwg.mxu0
    %1094 = vmatpush.bf16.msra.mxu0 %v722
    %1095 = vmatpush.bf16.msra.mxu0 %v720
    %1096 = vmatpush.bf16.msra.mxu0 %v718
    %1097 = vmatpush.bf16.msra.mxu0 %v716
    %1098 = vmatpush.bf16.msra.mxu0 %v714
    %1099 = vmatpush.bf16.msra.mxu0 %v712
    %1100 = vmatpush.bf16.msra.mxu0 %v710
    %1101 = vmatpush.bf16.msra.mxu0 %v708
    %1102 = vmatmul.bf16.gmra.mxu0 %v180
    %v1103 = vpop.f32.mrf.mxu0
    %v1104 = vadd.f32 %v1055, %v1103
    %v1105 = vpop.f32.mrf.mxu0
    %v1106 = vadd.f32 %v1057, %v1105
    %1107 = vmatmul.bf16.gmra.mxu0 %v187
    %v1108 = vpop.f32.mrf.mxu0
    %v1109 = vadd.f32 %v1060, %v1108
    %v1110 = vpop.f32.mrf.mxu0
    %v1111 = vadd.f32 %v1062, %v1110
    %1112 = vmatmul.bf16.gmra.mxu0 %v194
    %v1113 = vpop.f32.mrf.mxu0
    %v1114 = vadd.f32 %v1065, %v1113
    %v1115 = vpop.f32.mrf.mxu0
    %v1116 = vadd.f32 %v1067, %v1115
    %1117 = vmatmul.bf16.gmra.mxu0 %v201
    %v1118 = vpop.f32.mrf.mxu0
    %v1119 = vadd.f32 %v1070, %v1118
    %v1120 = vpop.f32.mrf.mxu0
    %v1121 = vadd.f32 %v1072, %v1120
    %1122 = vmatmul.bf16.gmra.mxu0 %v208
    %v1123 = vpop.f32.mrf.mxu0
    %v1124 = vadd.f32 %v1075, %v1123
    %v1125 = vpop.f32.mrf.mxu0
    %v1126 = vadd.f32 %v1077, %v1125
    %1127 = vmatmul.bf16.gmra.mxu0 %v215
    %v1128 = vpop.f32.mrf.mxu0
    %v1129 = vadd.f32 %v1080, %v1128
    %v1130 = vpop.f32.mrf.mxu0
    %v1131 = vadd.f32 %v1082, %v1130
    %1132 = vmatmul.bf16.gmra.mxu0 %v222
    %v1133 = vpop.f32.mrf.mxu0
    %v1134 = vadd.f32 %v1085, %v1133
    %v1135 = vpop.f32.mrf.mxu0
    %v1136 = vadd.f32 %v1087, %v1135
    %1137 = vmatmul.bf16.gmra.mxu0 %v229
    %v1138 = vpop.f32.mrf.mxu0
    %v1139 = vadd.f32 %v1090, %v1138
    %v1140 = vpop.f32.mrf.mxu0
    %v1141 = vadd.f32 %v1092, %v1140
    %1142 = vdwg.mxu0
    %1143 = vmatpush.bf16.msra.mxu0 0
    %1144 = vmatpush.bf16.msra.mxu0 0
    %1145 = vmatpush.bf16.msra.mxu0 0
    %1146 = vmatpush.bf16.msra.mxu0 0
    %1147 = vmatpush.bf16.msra.mxu0 0
    %1148 = vmatpush.bf16.msra.mxu0 0
    %1149 = vmatpush.bf16.msra.mxu0 0
    %1150 = vmatpush.bf16.msra.mxu0 %v724
    %1151 = vmatmul.bf16.gmra.mxu0 %v826
    %v1152 = vpop.f32.mrf.mxu0
    %v1153 = vadd.f32 %v1104, %v1152
    %v1154 = vpop.f32.mrf.mxu0
    %v1155 = vadd.f32 %v1106, %v1154
    %1156 = vmatmul.bf16.gmra.mxu0 %v829
    %v1157 = vpop.f32.mrf.mxu0
    %v1158 = vadd.f32 %v1109, %v1157
    %v1159 = vpop.f32.mrf.mxu0
    %v1160 = vadd.f32 %v1111, %v1159
    %1161 = vmatmul.bf16.gmra.mxu0 %v832
    %v1162 = vpop.f32.mrf.mxu0
    %v1163 = vadd.f32 %v1114, %v1162
    %v1164 = vpop.f32.mrf.mxu0
    %v1165 = vadd.f32 %v1116, %v1164
    %1166 = vmatmul.bf16.gmra.mxu0 %v835
    %v1167 = vpop.f32.mrf.mxu0
    %v1168 = vadd.f32 %v1119, %v1167
    %v1169 = vpop.f32.mrf.mxu0
    %v1170 = vadd.f32 %v1121, %v1169
    %1171 = vmatmul.bf16.gmra.mxu0 %v838
    %v1172 = vpop.f32.mrf.mxu0
    %v1173 = vadd.f32 %v1124, %v1172
    %v1174 = vpop.f32.mrf.mxu0
    %v1175 = vadd.f32 %v1126, %v1174
    %1176 = vmatmul.bf16.gmra.mxu0 %v841
    %v1177 = vpop.f32.mrf.mxu0
    %v1178 = vadd.f32 %v1129, %v1177
    %v1179 = vpop.f32.mrf.mxu0
    %v1180 = vadd.f32 %v1131, %v1179
    %1181 = vmatmul.bf16.gmra.mxu0 %v844
    %v1182 = vpop.f32.mrf.mxu0
    %v1183 = vadd.f32 %v1134, %v1182
    %v1184 = vpop.f32.mrf.mxu0
    %v1185 = vadd.f32 %v1136, %v1184
    %1186 = vmatmul.bf16.gmra.mxu0 %v847
    %v1187 = vpop.f32.mrf.mxu0
    %v1188 = vadd.f32 %v1139, %v1187
    %v1189 = vpop.f32.mrf.mxu0
    %v1190 = vadd.f32 %v1141, %v1189
    %1191 = vdwg.mxu0
    %1192 = vmatpush.bf16.msra.mxu0 %v643
    %1193 = vmatpush.bf16.msra.mxu0 %v641
    %1194 = vmatpush.bf16.msra.mxu0 %v639
    %1195 = vmatpush.bf16.msra.mxu0 %v637
    %1196 = vmatpush.bf16.msra.mxu0 %v635
    %1197 = vmatpush.bf16.msra.mxu0 %v633
    %1198 = vmatpush.bf16.msra.mxu0 %v631
    %1199 = vmatpush.bf16.msra.mxu0 %v629
    %1200 = vmatmul.bf16.gmra.mxu0 %v175
    %v1201 = vpop.f32.mrf.mxu0
    %v1202 = vadd.f32 %v331, %v1201
    %v1203 = vpop.f32.mrf.mxu0
    %v1204 = vadd.f32 %v331, %v1203
    %1205 = vmatmul.bf16.gmra.mxu0 %v182
    %v1206 = vpop.f32.mrf.mxu0
    %v1207 = vadd.f32 %v331, %v1206
    %v1208 = vpop.f32.mrf.mxu0
    %v1209 = vadd.f32 %v331, %v1208
    %1210 = vmatmul.bf16.gmra.mxu0 %v189
    %v1211 = vpop.f32.mrf.mxu0
    %v1212 = vadd.f32 %v331, %v1211
    %v1213 = vpop.f32.mrf.mxu0
    %v1214 = vadd.f32 %v331, %v1213
    %1215 = vmatmul.bf16.gmra.mxu0 %v196
    %v1216 = vpop.f32.mrf.mxu0
    %v1217 = vadd.f32 %v331, %v1216
    %v1218 = vpop.f32.mrf.mxu0
    %v1219 = vadd.f32 %v331, %v1218
    %1220 = vmatmul.bf16.gmra.mxu0 %v203
    %v1221 = vpop.f32.mrf.mxu0
    %v1222 = vadd.f32 %v331, %v1221
    %v1223 = vpop.f32.mrf.mxu0
    %v1224 = vadd.f32 %v331, %v1223
    %1225 = vmatmul.bf16.gmra.mxu0 %v210
    %v1226 = vpop.f32.mrf.mxu0
    %v1227 = vadd.f32 %v331, %v1226
    %v1228 = vpop.f32.mrf.mxu0
    %v1229 = vadd.f32 %v331, %v1228
    %1230 = vmatmul.bf16.gmra.mxu0 %v217
    %v1231 = vpop.f32.mrf.mxu0
    %v1232 = vadd.f32 %v331, %v1231
    %v1233 = vpop.f32.mrf.mxu0
    %v1234 = vadd.f32 %v331, %v1233
    %1235 = vmatmul.bf16.gmra.mxu0 %v224
    %v1236 = vpop.f32.mrf.mxu0
    %v1237 = vadd.f32 %v331, %v1236
    %v1238 = vpop.f32.mrf.mxu0
    %v1239 = vadd.f32 %v331, %v1238
    %1240 = vdwg.mxu0
    %1241 = vmatpush.bf16.msra.mxu0 %v659
    %1242 = vmatpush.bf16.msra.mxu0 %v657
    %1243 = vmatpush.bf16.msra.mxu0 %v655
    %1244 = vmatpush.bf16.msra.mxu0 %v653
    %1245 = vmatpush.bf16.msra.mxu0 %v651
    %1246 = vmatpush.bf16.msra.mxu0 %v649
    %1247 = vmatpush.bf16.msra.mxu0 %v647
    %1248 = vmatpush.bf16.msra.mxu0 %v645
    %1249 = vmatmul.bf16.gmra.mxu0 %v176
    %v1250 = vpop.f32.mrf.mxu0
    %v1251 = vadd.f32 %v1202, %v1250
    %v1252 = vpop.f32.mrf.mxu0
    %v1253 = vadd.f32 %v1204, %v1252
    %1254 = vmatmul.bf16.gmra.mxu0 %v183
    %v1255 = vpop.f32.mrf.mxu0
    %v1256 = vadd.f32 %v1207, %v1255
    %v1257 = vpop.f32.mrf.mxu0
    %v1258 = vadd.f32 %v1209, %v1257
    %1259 = vmatmul.bf16.gmra.mxu0 %v190
    %v1260 = vpop.f32.mrf.mxu0
    %v1261 = vadd.f32 %v1212, %v1260
    %v1262 = vpop.f32.mrf.mxu0
    %v1263 = vadd.f32 %v1214, %v1262
    %1264 = vmatmul.bf16.gmra.mxu0 %v197
    %v1265 = vpop.f32.mrf.mxu0
    %v1266 = vadd.f32 %v1217, %v1265
    %v1267 = vpop.f32.mrf.mxu0
    %v1268 = vadd.f32 %v1219, %v1267
    %1269 = vmatmul.bf16.gmra.mxu0 %v204
    %v1270 = vpop.f32.mrf.mxu0
    %v1271 = vadd.f32 %v1222, %v1270
    %v1272 = vpop.f32.mrf.mxu0
    %v1273 = vadd.f32 %v1224, %v1272
    %1274 = vmatmul.bf16.gmra.mxu0 %v211
    %v1275 = vpop.f32.mrf.mxu0
    %v1276 = vadd.f32 %v1227, %v1275
    %v1277 = vpop.f32.mrf.mxu0
    %v1278 = vadd.f32 %v1229, %v1277
    %1279 = vmatmul.bf16.gmra.mxu0 %v218
    %v1280 = vpop.f32.mrf.mxu0
    %v1281 = vadd.f32 %v1232, %v1280
    %v1282 = vpop.f32.mrf.mxu0
    %v1283 = vadd.f32 %v1234, %v1282
    %1284 = vmatmul.bf16.gmra.mxu0 %v225
    %v1285 = vpop.f32.mrf.mxu0
    %v1286 = vadd.f32 %v1237, %v1285
    %v1287 = vpop.f32.mrf.mxu0
    %v1288 = vadd.f32 %v1239, %v1287
    %1289 = vdwg.mxu0
    %1290 = vmatpush.bf16.msra.mxu0 %v675
    %1291 = vmatpush.bf16.msra.mxu0 %v673
    %1292 = vmatpush.bf16.msra.mxu0 %v671
    %1293 = vmatpush.bf16.msra.mxu0 %v669
    %1294 = vmatpush.bf16.msra.mxu0 %v667
    %1295 = vmatpush.bf16.msra.mxu0 %v665
    %1296 = vmatpush.bf16.msra.mxu0 %v663
    %1297 = vmatpush.bf16.msra.mxu0 %v661
    %1298 = vmatmul.bf16.gmra.mxu0 %v177
    %v1299 = vpop.f32.mrf.mxu0
    %v1300 = vadd.f32 %v1251, %v1299
    %v1301 = vpop.f32.mrf.mxu0
    %v1302 = vadd.f32 %v1253, %v1301
    %1303 = vmatmul.bf16.gmra.mxu0 %v184
    %v1304 = vpop.f32.mrf.mxu0
    %v1305 = vadd.f32 %v1256, %v1304
    %v1306 = vpop.f32.mrf.mxu0
    %v1307 = vadd.f32 %v1258, %v1306
    %1308 = vmatmul.bf16.gmra.mxu0 %v191
    %v1309 = vpop.f32.mrf.mxu0
    %v1310 = vadd.f32 %v1261, %v1309
    %v1311 = vpop.f32.mrf.mxu0
    %v1312 = vadd.f32 %v1263, %v1311
    %1313 = vmatmul.bf16.gmra.mxu0 %v198
    %v1314 = vpop.f32.mrf.mxu0
    %v1315 = vadd.f32 %v1266, %v1314
    %v1316 = vpop.f32.mrf.mxu0
    %v1317 = vadd.f32 %v1268, %v1316
    %1318 = vmatmul.bf16.gmra.mxu0 %v205
    %v1319 = vpop.f32.mrf.mxu0
    %v1320 = vadd.f32 %v1271, %v1319
    %v1321 = vpop.f32.mrf.mxu0
    %v1322 = vadd.f32 %v1273, %v1321
    %1323 = vmatmul.bf16.gmra.mxu0 %v212
    %v1324 = vpop.f32.mrf.mxu0
    %v1325 = vadd.f32 %v1276, %v1324
    %v1326 = vpop.f32.mrf.mxu0
    %v1327 = vadd.f32 %v1278, %v1326
    %1328 = vmatmul.bf16.gmra.mxu0 %v219
    %v1329 = vpop.f32.mrf.mxu0
    %v1330 = vadd.f32 %v1281, %v1329
    %v1331 = vpop.f32.mrf.mxu0
    %v1332 = vadd.f32 %v1283, %v1331
    %1333 = vmatmul.bf16.gmra.mxu0 %v226
    %v1334 = vpop.f32.mrf.mxu0
    %v1335 = vadd.f32 %v1286, %v1334
    %v1336 = vpop.f32.mrf.mxu0
    %v1337 = vadd.f32 %v1288, %v1336
    %1338 = vdwg.mxu0
    %1339 = vmatpush.bf16.msra.mxu0 %v691
    %1340 = vmatpush.bf16.msra.mxu0 %v689
    %1341 = vmatpush.bf16.msra.mxu0 %v687
    %1342 = vmatpush.bf16.msra.mxu0 %v685
    %1343 = vmatpush.bf16.msra.mxu0 %v683
    %1344 = vmatpush.bf16.msra.mxu0 %v681
    %1345 = vmatpush.bf16.msra.mxu0 %v679
    %1346 = vmatpush.bf16.msra.mxu0 %v677
    %1347 = vmatmul.bf16.gmra.mxu0 %v178
    %v1348 = vpop.f32.mrf.mxu0
    %v1349 = vadd.f32 %v1300, %v1348
    %v1350 = vpop.f32.mrf.mxu0
    %v1351 = vadd.f32 %v1302, %v1350
    %1352 = vmatmul.bf16.gmra.mxu0 %v185
    %v1353 = vpop.f32.mrf.mxu0
    %v1354 = vadd.f32 %v1305, %v1353
    %v1355 = vpop.f32.mrf.mxu0
    %v1356 = vadd.f32 %v1307, %v1355
    %1357 = vmatmul.bf16.gmra.mxu0 %v192
    %v1358 = vpop.f32.mrf.mxu0
    %v1359 = vadd.f32 %v1310, %v1358
    %v1360 = vpop.f32.mrf.mxu0
    %v1361 = vadd.f32 %v1312, %v1360
    %1362 = vmatmul.bf16.gmra.mxu0 %v199
    %v1363 = vpop.f32.mrf.mxu0
    %v1364 = vadd.f32 %v1315, %v1363
    %v1365 = vpop.f32.mrf.mxu0
    %v1366 = vadd.f32 %v1317, %v1365
    %1367 = vmatmul.bf16.gmra.mxu0 %v206
    %v1368 = vpop.f32.mrf.mxu0
    %v1369 = vadd.f32 %v1320, %v1368
    %v1370 = vpop.f32.mrf.mxu0
    %v1371 = vadd.f32 %v1322, %v1370
    %1372 = vmatmul.bf16.gmra.mxu0 %v213
    %v1373 = vpop.f32.mrf.mxu0
    %v1374 = vadd.f32 %v1325, %v1373
    %v1375 = vpop.f32.mrf.mxu0
    %v1376 = vadd.f32 %v1327, %v1375
    %1377 = vmatmul.bf16.gmra.mxu0 %v220
    %v1378 = vpop.f32.mrf.mxu0
    %v1379 = vadd.f32 %v1330, %v1378
    %v1380 = vpop.f32.mrf.mxu0
    %v1381 = vadd.f32 %v1332, %v1380
    %1382 = vmatmul.bf16.gmra.mxu0 %v227
    %v1383 = vpop.f32.mrf.mxu0
    %v1384 = vadd.f32 %v1335, %v1383
    %v1385 = vpop.f32.mrf.mxu0
    %v1386 = vadd.f32 %v1337, %v1385
    %1387 = vdwg.mxu0
    %1388 = vmatpush.bf16.msra.mxu0 %v707
    %1389 = vmatpush.bf16.msra.mxu0 %v705
    %1390 = vmatpush.bf16.msra.mxu0 %v703
    %1391 = vmatpush.bf16.msra.mxu0 %v701
    %1392 = vmatpush.bf16.msra.mxu0 %v699
    %1393 = vmatpush.bf16.msra.mxu0 %v697
    %1394 = vmatpush.bf16.msra.mxu0 %v695
    %1395 = vmatpush.bf16.msra.mxu0 %v693
    %1396 = vmatmul.bf16.gmra.mxu0 %v179
    %v1397 = vpop.f32.mrf.mxu0
    %v1398 = vadd.f32 %v1349, %v1397
    %v1399 = vpop.f32.mrf.mxu0
    %v1400 = vadd.f32 %v1351, %v1399
    %1401 = vmatmul.bf16.gmra.mxu0 %v186
    %v1402 = vpop.f32.mrf.mxu0
    %v1403 = vadd.f32 %v1354, %v1402
    %v1404 = vpop.f32.mrf.mxu0
    %v1405 = vadd.f32 %v1356, %v1404
    %1406 = vmatmul.bf16.gmra.mxu0 %v193
    %v1407 = vpop.f32.mrf.mxu0
    %v1408 = vadd.f32 %v1359, %v1407
    %v1409 = vpop.f32.mrf.mxu0
    %v1410 = vadd.f32 %v1361, %v1409
    %1411 = vmatmul.bf16.gmra.mxu0 %v200
    %v1412 = vpop.f32.mrf.mxu0
    %v1413 = vadd.f32 %v1364, %v1412
    %v1414 = vpop.f32.mrf.mxu0
    %v1415 = vadd.f32 %v1366, %v1414
    %1416 = vmatmul.bf16.gmra.mxu0 %v207
    %v1417 = vpop.f32.mrf.mxu0
    %v1418 = vadd.f32 %v1369, %v1417
    %v1419 = vpop.f32.mrf.mxu0
    %v1420 = vadd.f32 %v1371, %v1419
    %1421 = vmatmul.bf16.gmra.mxu0 %v214
    %v1422 = vpop.f32.mrf.mxu0
    %v1423 = vadd.f32 %v1374, %v1422
    %v1424 = vpop.f32.mrf.mxu0
    %v1425 = vadd.f32 %v1376, %v1424
    %1426 = vmatmul.bf16.gmra.mxu0 %v221
    %v1427 = vpop.f32.mrf.mxu0
    %v1428 = vadd.f32 %v1379, %v1427
    %v1429 = vpop.f32.mrf.mxu0
    %v1430 = vadd.f32 %v1381, %v1429
    %1431 = vmatmul.bf16.gmra.mxu0 %v228
    %v1432 = vpop.f32.mrf.mxu0
    %v1433 = vadd.f32 %v1384, %v1432
    %v1434 = vpop.f32.mrf.mxu0
    %v1435 = vadd.f32 %v1386, %v1434
    %1436 = vdwg.mxu0
    %1437 = vmatpush.bf16.msra.mxu0 %v723
    %1438 = vmatpush.bf16.msra.mxu0 %v721
    %1439 = vmatpush.bf16.msra.mxu0 %v719
    %1440 = vmatpush.bf16.msra.mxu0 %v717
    %1441 = vmatpush.bf16.msra.mxu0 %v715
    %1442 = vmatpush.bf16.msra.mxu0 %v713
    %1443 = vmatpush.bf16.msra.mxu0 %v711
    %1444 = vmatpush.bf16.msra.mxu0 %v709
    %1445 = vmatmul.bf16.gmra.mxu0 %v180
    %v1446 = vpop.f32.mrf.mxu0
    %v1447 = vadd.f32 %v1398, %v1446
    %v1448 = vpop.f32.mrf.mxu0
    %v1449 = vadd.f32 %v1400, %v1448
    %1450 = vmatmul.bf16.gmra.mxu0 %v187
    %v1451 = vpop.f32.mrf.mxu0
    %v1452 = vadd.f32 %v1403, %v1451
    %v1453 = vpop.f32.mrf.mxu0
    %v1454 = vadd.f32 %v1405, %v1453
    %1455 = vmatmul.bf16.gmra.mxu0 %v194
    %v1456 = vpop.f32.mrf.mxu0
    %v1457 = vadd.f32 %v1408, %v1456
    %v1458 = vpop.f32.mrf.mxu0
    %v1459 = vadd.f32 %v1410, %v1458
    %1460 = vmatmul.bf16.gmra.mxu0 %v201
    %v1461 = vpop.f32.mrf.mxu0
    %v1462 = vadd.f32 %v1413, %v1461
    %v1463 = vpop.f32.mrf.mxu0
    %v1464 = vadd.f32 %v1415, %v1463
    %1465 = vmatmul.bf16.gmra.mxu0 %v208
    %v1466 = vpop.f32.mrf.mxu0
    %v1467 = vadd.f32 %v1418, %v1466
    %v1468 = vpop.f32.mrf.mxu0
    %v1469 = vadd.f32 %v1420, %v1468
    %1470 = vmatmul.bf16.gmra.mxu0 %v215
    %v1471 = vpop.f32.mrf.mxu0
    %v1472 = vadd.f32 %v1423, %v1471
    %v1473 = vpop.f32.mrf.mxu0
    %v1474 = vadd.f32 %v1425, %v1473
    %1475 = vmatmul.bf16.gmra.mxu0 %v222
    %v1476 = vpop.f32.mrf.mxu0
    %v1477 = vadd.f32 %v1428, %v1476
    %v1478 = vpop.f32.mrf.mxu0
    %v1479 = vadd.f32 %v1430, %v1478
    %1480 = vmatmul.bf16.gmra.mxu0 %v229
    %v1481 = vpop.f32.mrf.mxu0
    %v1482 = vadd.f32 %v1433, %v1481
    %v1483 = vpop.f32.mrf.mxu0
    %v1484 = vadd.f32 %v1435, %v1483
    %1485 = vdwg.mxu0
    %1486 = vmatpush.bf16.msra.mxu0 0
    %1487 = vmatpush.bf16.msra.mxu0 0
    %1488 = vmatpush.bf16.msra.mxu0 0
    %1489 = vmatpush.bf16.msra.mxu0 0
    %1490 = vmatpush.bf16.msra.mxu0 0
    %1491 = vmatpush.bf16.msra.mxu0 0
    %1492 = vmatpush.bf16.msra.mxu0 0
    %1493 = vmatpush.bf16.msra.mxu0 %v725
    %1494 = vmatmul.bf16.gmra.mxu0 %v826
    %v1495 = vpop.f32.mrf.mxu0
    %v1496 = vadd.f32 %v1447, %v1495
    %v1497 = vpop.f32.mrf.mxu0
    %v1498 = vadd.f32 %v1449, %v1497
    %1499 = vmatmul.bf16.gmra.mxu0 %v829
    %v1500 = vpop.f32.mrf.mxu0
    %v1501 = vadd.f32 %v1452, %v1500
    %v1502 = vpop.f32.mrf.mxu0
    %v1503 = vadd.f32 %v1454, %v1502
    %1504 = vmatmul.bf16.gmra.mxu0 %v832
    %v1505 = vpop.f32.mrf.mxu0
    %v1506 = vadd.f32 %v1457, %v1505
    %v1507 = vpop.f32.mrf.mxu0
    %v1508 = vadd.f32 %v1459, %v1507
    %1509 = vmatmul.bf16.gmra.mxu0 %v835
    %v1510 = vpop.f32.mrf.mxu0
    %v1511 = vadd.f32 %v1462, %v1510
    %v1512 = vpop.f32.mrf.mxu0
    %v1513 = vadd.f32 %v1464, %v1512
    %1514 = vmatmul.bf16.gmra.mxu0 %v838
    %v1515 = vpop.f32.mrf.mxu0
    %v1516 = vadd.f32 %v1467, %v1515
    %v1517 = vpop.f32.mrf.mxu0
    %v1518 = vadd.f32 %v1469, %v1517
    %1519 = vmatmul.bf16.gmra.mxu0 %v841
    %v1520 = vpop.f32.mrf.mxu0
    %v1521 = vadd.f32 %v1472, %v1520
    %v1522 = vpop.f32.mrf.mxu0
    %v1523 = vadd.f32 %v1474, %v1522
    %1524 = vmatmul.bf16.gmra.mxu0 %v844
    %v1525 = vpop.f32.mrf.mxu0
    %v1526 = vadd.f32 %v1477, %v1525
    %v1527 = vpop.f32.mrf.mxu0
    %v1528 = vadd.f32 %v1479, %v1527
    %1529 = vmatmul.bf16.gmra.mxu0 %v847
    %v1530 = vpop.f32.mrf.mxu0
    %v1531 = vadd.f32 %v1482, %v1530
    %v1532 = vpop.f32.mrf.mxu0
    %v1533 = vadd.f32 %v1484, %v1532
    %1534 = vdwg.mxu0
    %v1535 = vmax.f32 %v1153, 0.0
    %v1536 = vmax.f32 %v1496, 0.0
    %v1537 = vmax.f32 %v1155, 0.0
    %v1538 = vmax.f32 %v1498, 0.0
    %v1539 = vmax.f32 %v1158, 0.0
    %v1540 = vmax.f32 %v1501, 0.0
    %v1541 = vmax.f32 %v1160, 0.0
    %v1542 = vmax.f32 %v1503, 0.0
    %v1543 = vmax.f32 %v1163, 0.0
    %v1544 = vmax.f32 %v1506, 0.0
    %v1545 = vmax.f32 %v1165, 0.0
    %v1546 = vmax.f32 %v1508, 0.0
    %v1547 = vmax.f32 %v1168, 0.0
    %v1548 = vmax.f32 %v1511, 0.0
    %v1549 = vmax.f32 %v1170, 0.0
    %v1550 = vmax.f32 %v1513, 0.0
    %v1551 = vmax.f32 %v1173, 0.0
    %v1552 = vmax.f32 %v1516, 0.0
    %v1553 = vmax.f32 %v1175, 0.0
    %v1554 = vmax.f32 %v1518, 0.0
    %v1555 = vmax.f32 %v1178, 0.0
    %v1556 = vmax.f32 %v1521, 0.0
    %v1557 = vmax.f32 %v1180, 0.0
    %v1558 = vmax.f32 %v1523, 0.0
    %v1559 = vmax.f32 %v1183, 0.0
    %v1560 = vmax.f32 %v1526, 0.0
    %v1561 = vmax.f32 %v1185, 0.0
    %v1562 = vmax.f32 %v1528, 0.0
    %v1563 = vmax.f32 %v1188, 0.0
    %v1564 = vmax.f32 %v1531, 0.0
    %v1565 = vmax.f32 %v1190, 0.0
    %v1566 = vmax.f32 %v1533, 0.0
    %v1567 = vpack.c.bf16 %v1537, %v1535
    %v1568 = vpack.c.bf16 %v1538, %v1536
    %v1569 = vpack.c.bf16 %v1541, %v1539
    %v1570 = vpack.c.bf16 %v1542, %v1540
    %v1571 = vpack.c.bf16 %v1545, %v1543
    %v1572 = vpack.c.bf16 %v1546, %v1544
    %v1573 = vpack.c.bf16 %v1549, %v1547
    %v1574 = vpack.c.bf16 %v1550, %v1548
    %v1575 = vpack.c.bf16 %v1553, %v1551
    %v1576 = vpack.c.bf16 %v1554, %v1552
    %v1577 = vpack.c.bf16 %v1557, %v1555
    %v1578 = vpack.c.bf16 %v1558, %v1556
    %v1579 = vpack.c.bf16 %v1561, %v1559
    %v1580 = vpack.c.bf16 %v1562, %v1560
    %v1581 = vpack.c.bf16 %v1565, %v1563
    %v1582 = vpack.c.bf16 %v1566, %v1564
    %v1583 = vld [vmem:[#allocation2] sm:$0xff]
    %v1584 = vld [vmem:[#allocation2 + $0x8] sm:$0xff]
    %v1585 = vld [vmem:[#allocation2 + $0x10] sm:$0xff]
    %v1586 = vld [vmem:[#allocation2 + $0x18] sm:$0xff]
    %v1587 = vld [vmem:[#allocation2 + $0x20] sm:$0xff]
    %v1588 = vld [vmem:[#allocation2 + $0x28] sm:$0xff]
    %v1589 = vld [vmem:[#allocation2 + $0x30] sm:$0xff]
    %v1590 = vld [vmem:[#allocation2 + $0x38] sm:$0xff]
    %v1591 = vld [vmem:[#allocation2 + $0x40] sm:$0xff]
    %v1592 = vld [vmem:[#allocation2 + $0x48] sm:$0xff]
    %v1593 = vld [vmem:[#allocation2 + $0x50] sm:$0xff]
    %v1594 = vld [vmem:[#allocation2 + $0x58] sm:$0xff]
    %v1595 = vld [vmem:[#allocation2 + $0x60] sm:$0xff]
    %v1596 = vld [vmem:[#allocation2 + $0x68] sm:$0xff]
    %v1597 = vld [vmem:[#allocation2 + $0x70] sm:$0xff]
    %v1598 = vld [vmem:[#allocation2 + $0x78] sm:$0xff]
    %v1599 = vld [vmem:[#allocation2 + $0x80] sm:$0xff]
    %v1600 = vld [vmem:[#allocation2 + $0x88] sm:$0xff]
    %v1601 = vld [vmem:[#allocation2 + $0x90] sm:$0xff]
    %v1602 = vld [vmem:[#allocation2 + $0x98] sm:$0xff]
    %v1603 = vld [vmem:[#allocation2 + $0xa0] sm:$0xff]
    %v1604 = vld [vmem:[#allocation2 + $0xa8] sm:$0xff]
    %v1605 = vld [vmem:[#allocation2 + $0xb0] sm:$0xff]
    %v1606 = vld [vmem:[#allocation2 + $0xb8] sm:$0xff]
    %v1607 = vld [vmem:[#allocation2 + $0xc0] sm:$0xff]
    %v1608 = vld [vmem:[#allocation2 + $0xc8] sm:$0xff]
    %v1609 = vld [vmem:[#allocation2 + $0xd0] sm:$0xff]
    %v1610 = vld [vmem:[#allocation2 + $0xd8] sm:$0xff]
    %v1611 = vld [vmem:[#allocation2 + $0xe0] sm:$0xff]
    %v1612 = vld [vmem:[#allocation2 + $0xe8] sm:$0xff]
    %v1613 = vld [vmem:[#allocation2 + $0xf0] sm:$0xff]
    %v1614 = vld [vmem:[#allocation2 + $0xf8] sm:$0xff]
    %v1616 = vperm.slane %v61, 0
    %v1617 = vperm.slane %v61, 1
    %v1652 = vunpack.c.l.b16 %v1583
    %v1653 = vunpack.c.h.b16 %v1583
    %v1654 = vunpack.c.l.b16 %v1584
    %v1655 = vunpack.c.h.b16 %v1584
    %v1656 = vunpack.c.l.b16 %v1585
    %v1657 = vunpack.c.h.b16 %v1585
    %v1658 = vunpack.c.l.b16 %v1586
    %v1659 = vunpack.c.h.b16 %v1586
    %v1660 = vunpack.c.l.b16 %v1587
    %v1661 = vunpack.c.h.b16 %v1587
    %v1662 = vunpack.c.l.b16 %v1588
    %v1663 = vunpack.c.h.b16 %v1588
    %v1664 = vunpack.c.l.b16 %v1589
    %v1665 = vunpack.c.h.b16 %v1589
    %v1666 = vunpack.c.l.b16 %v1590
    %v1667 = vunpack.c.h.b16 %v1590
    %v1668 = vunpack.c.l.b16 %v1591
    %v1669 = vunpack.c.h.b16 %v1591
    %v1670 = vunpack.c.l.b16 %v1592
    %v1671 = vunpack.c.h.b16 %v1592
    %v1672 = vunpack.c.l.b16 %v1593
    %v1673 = vunpack.c.h.b16 %v1593
    %v1674 = vunpack.c.l.b16 %v1594
    %v1675 = vunpack.c.h.b16 %v1594
    %v1676 = vunpack.c.l.b16 %v1595
    %v1677 = vunpack.c.h.b16 %v1595
    %v1678 = vunpack.c.l.b16 %v1596
    %v1679 = vunpack.c.h.b16 %v1596
    %v1680 = vunpack.c.l.b16 %v1597
    %v1681 = vunpack.c.h.b16 %v1597
    %v1682 = vunpack.c.l.b16 %v1598
    %v1683 = vunpack.c.h.b16 %v1598
    %v1684 = vunpack.c.l.b16 %v1599
    %v1685 = vunpack.c.h.b16 %v1599
    %v1686 = vunpack.c.l.b16 %v1600
    %v1687 = vunpack.c.h.b16 %v1600
    %v1688 = vunpack.c.l.b16 %v1601
    %v1689 = vunpack.c.h.b16 %v1601
    %v1690 = vunpack.c.l.b16 %v1602
    %v1691 = vunpack.c.h.b16 %v1602
    %v1692 = vunpack.c.l.b16 %v1603
    %v1693 = vunpack.c.h.b16 %v1603
    %v1694 = vunpack.c.l.b16 %v1604
    %v1695 = vunpack.c.h.b16 %v1604
    %v1696 = vunpack.c.l.b16 %v1605
    %v1697 = vunpack.c.h.b16 %v1605
    %v1698 = vunpack.c.l.b16 %v1606
    %v1699 = vunpack.c.h.b16 %v1606
    %v1700 = vunpack.c.l.b16 %v1607
    %v1701 = vunpack.c.h.b16 %v1607
    %v1702 = vunpack.c.l.b16 %v1608
    %v1703 = vunpack.c.h.b16 %v1608
    %v1704 = vunpack.c.l.b16 %v1609
    %v1705 = vunpack.c.h.b16 %v1609
    %v1706 = vunpack.c.l.b16 %v1610
    %v1707 = vunpack.c.h.b16 %v1610
    %v1708 = vunpack.c.l.b16 %v1611
    %v1709 = vunpack.c.h.b16 %v1611
    %v1710 = vunpack.c.l.b16 %v1612
    %v1711 = vunpack.c.h.b16 %v1612
    %v1712 = vunpack.c.l.b16 %v1613
    %v1713 = vunpack.c.h.b16 %v1613
    %v1714 = vunpack.c.l.b16 %v1614
    %v1715 = vunpack.c.h.b16 %v1614
    %v1716 = vpack.c.b16 %v1654, %v1652
    %v1717 = vpack.c.b16 %v1655, %v1653
    %v1718 = vpack.c.b16 %v1658, %v1656
    %v1719 = vpack.c.b16 %v1659, %v1657
    %v1720 = vpack.c.b16 %v1662, %v1660
    %v1721 = vpack.c.b16 %v1663, %v1661
    %v1722 = vpack.c.b16 %v1666, %v1664
    %v1723 = vpack.c.b16 %v1667, %v1665
    %v1724 = vpack.c.b16 %v1670, %v1668
    %v1725 = vpack.c.b16 %v1671, %v1669
    %v1726 = vpack.c.b16 %v1674, %v1672
    %v1727 = vpack.c.b16 %v1675, %v1673
    %v1728 = vpack.c.b16 %v1678, %v1676
    %v1729 = vpack.c.b16 %v1679, %v1677
    %v1730 = vpack.c.b16 %v1682, %v1680
    %v1731 = vpack.c.b16 %v1683, %v1681
    %v1732 = vpack.c.b16 %v1686, %v1684
    %v1733 = vpack.c.b16 %v1687, %v1685
    %v1734 = vpack.c.b16 %v1690, %v1688
    %v1735 = vpack.c.b16 %v1691, %v1689
    %v1736 = vpack.c.b16 %v1694, %v1692
    %v1737 = vpack.c.b16 %v1695, %v1693
    %v1738 = vpack.c.b16 %v1698, %v1696
    %v1739 = vpack.c.b16 %v1699, %v1697
    %v1740 = vpack.c.b16 %v1702, %v1700
    %v1741 = vpack.c.b16 %v1703, %v1701
    %v1742 = vpack.c.b16 %v1706, %v1704
    %v1743 = vpack.c.b16 %v1707, %v1705
    %v1744 = vpack.c.b16 %v1710, %v1708
    %v1745 = vpack.c.b16 %v1711, %v1709
    %v1746 = vpack.c.b16 %v1714, %v1712
    %v1747 = vpack.c.b16 %v1715, %v1713
    %1780 = vmatpush.bf16.msra.mxu0 %v1730
    %1781 = vmatpush.bf16.msra.mxu0 %v1728
    %1782 = vmatpush.bf16.msra.mxu0 %v1726
    %1783 = vmatpush.bf16.msra.mxu0 %v1724
    %1784 = vmatpush.bf16.msra.mxu0 %v1722
    %1785 = vmatpush.bf16.msra.mxu0 %v1720
    %1786 = vmatpush.bf16.msra.mxu0 %v1718
    %1787 = vmatpush.bf16.msra.mxu0 %v1716
    %1788 = vmatmul.bf16.gmra.mxu0 %v1567
    %v1789 = vpop.f32.mrf.mxu0
    %v1790 = vadd.f32 %v1616, %v1789
    %v1791 = vpop.f32.mrf.mxu0
    %v1792 = vadd.f32 %v1616, %v1791
    %1793 = vmatmul.bf16.gmra.mxu0 %v1569
    %v1794 = vpop.f32.mrf.mxu0
    %v1795 = vadd.f32 %v1616, %v1794
    %v1796 = vpop.f32.mrf.mxu0
    %v1797 = vadd.f32 %v1616, %v1796
    %1798 = vmatmul.bf16.gmra.mxu0 %v1571
    %v1799 = vpop.f32.mrf.mxu0
    %v1800 = vadd.f32 %v1616, %v1799
    %v1801 = vpop.f32.mrf.mxu0
    %v1802 = vadd.f32 %v1616, %v1801
    %1803 = vmatmul.bf16.gmra.mxu0 %v1573
    %v1804 = vpop.f32.mrf.mxu0
    %v1805 = vadd.f32 %v1616, %v1804
    %v1806 = vpop.f32.mrf.mxu0
    %v1807 = vadd.f32 %v1616, %v1806
    %1808 = vmatmul.bf16.gmra.mxu0 %v1575
    %v1809 = vpop.f32.mrf.mxu0
    %v1810 = vadd.f32 %v1616, %v1809
    %v1811 = vpop.f32.mrf.mxu0
    %v1812 = vadd.f32 %v1616, %v1811
    %1813 = vmatmul.bf16.gmra.mxu0 %v1577
    %v1814 = vpop.f32.mrf.mxu0
    %v1815 = vadd.f32 %v1616, %v1814
    %v1816 = vpop.f32.mrf.mxu0
    %v1817 = vadd.f32 %v1616, %v1816
    %1818 = vmatmul.bf16.gmra.mxu0 %v1579
    %v1819 = vpop.f32.mrf.mxu0
    %v1820 = vadd.f32 %v1616, %v1819
    %v1821 = vpop.f32.mrf.mxu0
    %v1822 = vadd.f32 %v1616, %v1821
    %1823 = vmatmul.bf16.gmra.mxu0 %v1581
    %v1824 = vpop.f32.mrf.mxu0
    %v1825 = vadd.f32 %v1616, %v1824
    %v1826 = vpop.f32.mrf.mxu0
    %v1827 = vadd.f32 %v1616, %v1826
    %1828 = vdwg.mxu0
    %1829 = vmatpush.bf16.msra.mxu0 %v1746
    %1830 = vmatpush.bf16.msra.mxu0 %v1744
    %1831 = vmatpush.bf16.msra.mxu0 %v1742
    %1832 = vmatpush.bf16.msra.mxu0 %v1740
    %1833 = vmatpush.bf16.msra.mxu0 %v1738
    %1834 = vmatpush.bf16.msra.mxu0 %v1736
    %1835 = vmatpush.bf16.msra.mxu0 %v1734
    %1836 = vmatpush.bf16.msra.mxu0 %v1732
    %1837 = vmatmul.bf16.gmra.mxu0 %v1568
    %v1838 = vpop.f32.mrf.mxu0
    %v1839 = vadd.f32 %v1790, %v1838
    %v1840 = vpop.f32.mrf.mxu0
    %v1841 = vadd.f32 %v1792, %v1840
    %1842 = vmatmul.bf16.gmra.mxu0 %v1570
    %v1843 = vpop.f32.mrf.mxu0
    %v1844 = vadd.f32 %v1795, %v1843
    %v1845 = vpop.f32.mrf.mxu0
    %v1846 = vadd.f32 %v1797, %v1845
    %1847 = vmatmul.bf16.gmra.mxu0 %v1572
    %v1848 = vpop.f32.mrf.mxu0
    %v1849 = vadd.f32 %v1800, %v1848
    %v1850 = vpop.f32.mrf.mxu0
    %v1851 = vadd.f32 %v1802, %v1850
    %1852 = vmatmul.bf16.gmra.mxu0 %v1574
    %v1853 = vpop.f32.mrf.mxu0
    %v1854 = vadd.f32 %v1805, %v1853
    %v1855 = vpop.f32.mrf.mxu0
    %v1856 = vadd.f32 %v1807, %v1855
    %1857 = vmatmul.bf16.gmra.mxu0 %v1576
    %v1858 = vpop.f32.mrf.mxu0
    %v1859 = vadd.f32 %v1810, %v1858
    %v1860 = vpop.f32.mrf.mxu0
    %v1861 = vadd.f32 %v1812, %v1860
    %1862 = vmatmul.bf16.gmra.mxu0 %v1578
    %v1863 = vpop.f32.mrf.mxu0
    %v1864 = vadd.f32 %v1815, %v1863
    %v1865 = vpop.f32.mrf.mxu0
    %v1866 = vadd.f32 %v1817, %v1865
    %1867 = vmatmul.bf16.gmra.mxu0 %v1580
    %v1868 = vpop.f32.mrf.mxu0
    %v1869 = vadd.f32 %v1820, %v1868
    %v1870 = vpop.f32.mrf.mxu0
    %v1871 = vadd.f32 %v1822, %v1870
    %1872 = vmatmul.bf16.gmra.mxu0 %v1582
    %v1873 = vpop.f32.mrf.mxu0
    %v1874 = vadd.f32 %v1825, %v1873
    %v1875 = vpop.f32.mrf.mxu0
    %v1876 = vadd.f32 %v1827, %v1875
    %1877 = vdwg.mxu0
    %1878 = vmatpush.bf16.msra.mxu0 %v1731
    %1879 = vmatpush.bf16.msra.mxu0 %v1729
    %1880 = vmatpush.bf16.msra.mxu0 %v1727
    %1881 = vmatpush.bf16.msra.mxu0 %v1725
    %1882 = vmatpush.bf16.msra.mxu0 %v1723
    %1883 = vmatpush.bf16.msra.mxu0 %v1721
    %1884 = vmatpush.bf16.msra.mxu0 %v1719
    %1885 = vmatpush.bf16.msra.mxu0 %v1717
    %1886 = vmatmul.bf16.gmra.mxu0 %v1567
    %v1887 = vpop.f32.mrf.mxu0
    %v1888 = vadd.f32 %v1617, %v1887
    %v1889 = vpop.f32.mrf.mxu0
    %v1890 = vadd.f32 %v1617, %v1889
    %1891 = vmatmul.bf16.gmra.mxu0 %v1569
    %v1892 = vpop.f32.mrf.mxu0
    %v1893 = vadd.f32 %v1617, %v1892
    %v1894 = vpop.f32.mrf.mxu0
    %v1895 = vadd.f32 %v1617, %v1894
    %1896 = vmatmul.bf16.gmra.mxu0 %v1571
    %v1897 = vpop.f32.mrf.mxu0
    %v1898 = vadd.f32 %v1617, %v1897
    %v1899 = vpop.f32.mrf.mxu0
    %v1900 = vadd.f32 %v1617, %v1899
    %1901 = vmatmul.bf16.gmra.mxu0 %v1573
    %v1902 = vpop.f32.mrf.mxu0
    %v1903 = vadd.f32 %v1617, %v1902
    %v1904 = vpop.f32.mrf.mxu0
    %v1905 = vadd.f32 %v1617, %v1904
    %1906 = vmatmul.bf16.gmra.mxu0 %v1575
    %v1907 = vpop.f32.mrf.mxu0
    %v1908 = vadd.f32 %v1617, %v1907
    %v1909 = vpop.f32.mrf.mxu0
    %v1910 = vadd.f32 %v1617, %v1909
    %1911 = vmatmul.bf16.gmra.mxu0 %v1577
    %v1912 = vpop.f32.mrf.mxu0
    %v1913 = vadd.f32 %v1617, %v1912
    %v1914 = vpop.f32.mrf.mxu0
    %v1915 = vadd.f32 %v1617, %v1914
    %1916 = vmatmul.bf16.gmra.mxu0 %v1579
    %v1917 = vpop.f32.mrf.mxu0
    %v1918 = vadd.f32 %v1617, %v1917
    %v1919 = vpop.f32.mrf.mxu0
    %v1920 = vadd.f32 %v1617, %v1919
    %1921 = vmatmul.bf16.gmra.mxu0 %v1581
    %v1922 = vpop.f32.mrf.mxu0
    %v1923 = vadd.f32 %v1617, %v1922
    %v1924 = vpop.f32.mrf.mxu0
    %v1925 = vadd.f32 %v1617, %v1924
    %1926 = vdwg.mxu0
    %1927 = vmatpush.bf16.msra.mxu0 %v1747
    %1928 = vmatpush.bf16.msra.mxu0 %v1745
    %1929 = vmatpush.bf16.msra.mxu0 %v1743
    %1930 = vmatpush.bf16.msra.mxu0 %v1741
    %1931 = vmatpush.bf16.msra.mxu0 %v1739
    %1932 = vmatpush.bf16.msra.mxu0 %v1737
    %1933 = vmatpush.bf16.msra.mxu0 %v1735
    %1934 = vmatpush.bf16.msra.mxu0 %v1733
    %1935 = vmatmul.bf16.gmra.mxu0 %v1568
    %v1936 = vpop.f32.mrf.mxu0
    %v1937 = vadd.f32 %v1888, %v1936
    %v1938 = vpop.f32.mrf.mxu0
    %v1939 = vadd.f32 %v1890, %v1938
    %1940 = vmatmul.bf16.gmra.mxu0 %v1570
    %v1941 = vpop.f32.mrf.mxu0
    %v1942 = vadd.f32 %v1893, %v1941
    %v1943 = vpop.f32.mrf.mxu0
    %v1944 = vadd.f32 %v1895, %v1943
    %1945 = vmatmul.bf16.gmra.mxu0 %v1572
    %v1946 = vpop.f32.mrf.mxu0
    %v1947 = vadd.f32 %v1898, %v1946
    %v1948 = vpop.f32.mrf.mxu0
    %v1949 = vadd.f32 %v1900, %v1948
    %1950 = vmatmul.bf16.gmra.mxu0 %v1574
    %v1951 = vpop.f32.mrf.mxu0
    %v1952 = vadd.f32 %v1903, %v1951
    %v1953 = vpop.f32.mrf.mxu0
    %v1954 = vadd.f32 %v1905, %v1953
    %1955 = vmatmul.bf16.gmra.mxu0 %v1576
    %v1956 = vpop.f32.mrf.mxu0
    %v1957 = vadd.f32 %v1908, %v1956
    %v1958 = vpop.f32.mrf.mxu0
    %v1959 = vadd.f32 %v1910, %v1958
    %1960 = vmatmul.bf16.gmra.mxu0 %v1578
    %v1961 = vpop.f32.mrf.mxu0
    %v1962 = vadd.f32 %v1913, %v1961
    %v1963 = vpop.f32.mrf.mxu0
    %v1964 = vadd.f32 %v1915, %v1963
    %1965 = vmatmul.bf16.gmra.mxu0 %v1580
    %v1966 = vpop.f32.mrf.mxu0
    %v1967 = vadd.f32 %v1918, %v1966
    %v1968 = vpop.f32.mrf.mxu0
    %v1969 = vadd.f32 %v1920, %v1968
    %1970 = vmatmul.bf16.gmra.mxu0 %v1582
    %v1971 = vpop.f32.mrf.mxu0
    %v1972 = vadd.f32 %v1923, %v1971
    %v1973 = vpop.f32.mrf.mxu0
    %v1974 = vadd.f32 %v1925, %v1973
    %1975 = vdwg.mxu0
    %v1976 = vmax.f32 %v1839, 0.0
    %v1977 = vmax.f32 %v1937, 0.0
    %v1978 = vmax.f32 %v1841, 0.0
    %v1979 = vmax.f32 %v1939, 0.0
    %v1980 = vmax.f32 %v1844, 0.0
    %v1981 = vmax.f32 %v1942, 0.0
    %v1982 = vmax.f32 %v1846, 0.0
    %v1983 = vmax.f32 %v1944, 0.0
    %v1984 = vmax.f32 %v1849, 0.0
    %v1985 = vmax.f32 %v1947, 0.0
    %v1986 = vmax.f32 %v1851, 0.0
    %v1987 = vmax.f32 %v1949, 0.0
    %v1988 = vmax.f32 %v1854, 0.0
    %v1989 = vmax.f32 %v1952, 0.0
    %v1990 = vmax.f32 %v1856, 0.0
    %v1991 = vmax.f32 %v1954, 0.0
    %v1992 = vmax.f32 %v1859, 0.0
    %v1993 = vmax.f32 %v1957, 0.0
    %v1994 = vmax.f32 %v1861, 0.0
    %v1995 = vmax.f32 %v1959, 0.0
    %v1996 = vmax.f32 %v1864, 0.0
    %v1997 = vmax.f32 %v1962, 0.0
    %v1998 = vmax.f32 %v1866, 0.0
    %v1999 = vmax.f32 %v1964, 0.0
    %v2000 = vmax.f32 %v1869, 0.0
    %v2001 = vmax.f32 %v1967, 0.0
    %v2002 = vmax.f32 %v1871, 0.0
    %v2003 = vmax.f32 %v1969, 0.0
    %v2004 = vmax.f32 %v1874, 0.0
    %v2005 = vmax.f32 %v1972, 0.0
    %v2006 = vmax.f32 %v1876, 0.0
    %v2007 = vmax.f32 %v1974, 0.0
    %v2008 = vpack.c.bf16 %v1978, %v1976
    %v2009 = vpack.c.bf16 %v1979, %v1977
    %v2010 = vpack.c.bf16 %v1982, %v1980
    %v2011 = vpack.c.bf16 %v1983, %v1981
    %v2012 = vpack.c.bf16 %v1986, %v1984
    %v2013 = vpack.c.bf16 %v1987, %v1985
    %v2014 = vpack.c.bf16 %v1990, %v1988
    %v2015 = vpack.c.bf16 %v1991, %v1989
    %v2016 = vpack.c.bf16 %v1994, %v1992
    %v2017 = vpack.c.bf16 %v1995, %v1993
    %v2018 = vpack.c.bf16 %v1998, %v1996
    %v2019 = vpack.c.bf16 %v1999, %v1997
    %v2020 = vpack.c.bf16 %v2002, %v2000
    %v2021 = vpack.c.bf16 %v2003, %v2001
    %v2022 = vpack.c.bf16 %v2006, %v2004
    %v2023 = vpack.c.bf16 %v2007, %v2005
    %v2024 = vld [vmem:[#allocation5] sm:$0xf]
    %v2025 = vld [vmem:[#allocation5 + $0x4] sm:$0xf]
    %v2026 = vld [vmem:[#allocation5 + $0x8] sm:$0xf]
    %v2027 = vld [vmem:[#allocation5 + $0xc] sm:$0xf]
    %v2028 = vld [vmem:[#allocation5 + $0x10] sm:$0xf]
    %v2029 = vld [vmem:[#allocation5 + $0x14] sm:$0xf]
    %v2030 = vld [vmem:[#allocation5 + $0x18] sm:$0xf]
    %v2031 = vld [vmem:[#allocation5 + $0x1c] sm:$0xf]
    %v2032 = vld [vmem:[#allocation5 + $0x20] sm:$0xf]
    %v2033 = vld [vmem:[#allocation5 + $0x24] sm:$0xf]
    %v2034 = vld [vmem:[#allocation5 + $0x28] sm:$0xf]
    %v2035 = vld [vmem:[#allocation5 + $0x2c] sm:$0xf]
    %v2036 = vld [vmem:[#allocation5 + $0x30] sm:$0xf]
    %v2037 = vld [vmem:[#allocation5 + $0x34] sm:$0xf]
    %v2038 = vld [vmem:[#allocation5 + $0x38] sm:$0xf]
    %v2039 = vld [vmem:[#allocation5 + $0x3c] sm:$0xf]
    %v2040 = vld [vmem:[#allocation5 + $0x40] sm:$0xf]
    %v2041 = vld [vmem:[#allocation5 + $0x44] sm:$0xf]
    %v2042 = vld [vmem:[#allocation5 + $0x48] sm:$0xf]
    %v2043 = vld [vmem:[#allocation5 + $0x4c] sm:$0xf]
    %v2044 = vld [vmem:[#allocation5 + $0x50] sm:$0xf]
    %v2045 = vld [vmem:[#allocation5 + $0x54] sm:$0xf]
    %v2046 = vld [vmem:[#allocation5 + $0x58] sm:$0xf]
    %v2047 = vld [vmem:[#allocation5 + $0x5c] sm:$0xf]
    %v2048 = vld [vmem:[#allocation5 + $0x60] sm:$0xf]
    %v2049 = vld [vmem:[#allocation5 + $0x64] sm:$0xf]
    %v2050 = vld [vmem:[#allocation5 + $0x68] sm:$0xf]
    %v2051 = vld [vmem:[#allocation5 + $0x6c] sm:$0xf]
    %v2052 = vld [vmem:[#allocation5 + $0x70] sm:$0xf]
    %v2053 = vld [vmem:[#allocation5 + $0x74] sm:$0xf]
    %v2054 = vld [vmem:[#allocation5 + $0x78] sm:$0xf]
    %v2055 = vld [vmem:[#allocation5 + $0x7c] sm:$0xf]
    %v2057 = vperm.slane %v62, 0
    %v2091 = vunpack.c.l.b16 %v2024
    %v2092 = vunpack.c.l.b16 %v2025
    %v2093 = vunpack.c.l.b16 %v2026
    %v2094 = vunpack.c.l.b16 %v2027
    %v2095 = vunpack.c.l.b16 %v2028
    %v2096 = vunpack.c.l.b16 %v2029
    %v2097 = vunpack.c.l.b16 %v2030
    %v2098 = vunpack.c.l.b16 %v2031
    %v2099 = vunpack.c.l.b16 %v2032
    %v2100 = vunpack.c.l.b16 %v2033
    %v2101 = vunpack.c.l.b16 %v2034
    %v2102 = vunpack.c.l.b16 %v2035
    %v2103 = vunpack.c.l.b16 %v2036
    %v2104 = vunpack.c.l.b16 %v2037
    %v2105 = vunpack.c.l.b16 %v2038
    %v2106 = vunpack.c.l.b16 %v2039
    %v2107 = vunpack.c.l.b16 %v2040
    %v2108 = vunpack.c.l.b16 %v2041
    %v2109 = vunpack.c.l.b16 %v2042
    %v2110 = vunpack.c.l.b16 %v2043
    %v2111 = vunpack.c.l.b16 %v2044
    %v2112 = vunpack.c.l.b16 %v2045
    %v2113 = vunpack.c.l.b16 %v2046
    %v2114 = vunpack.c.l.b16 %v2047
    %v2115 = vunpack.c.l.b16 %v2048
    %v2116 = vunpack.c.l.b16 %v2049
    %v2117 = vunpack.c.l.b16 %v2050
    %v2118 = vunpack.c.l.b16 %v2051
    %v2119 = vunpack.c.l.b16 %v2052
    %v2120 = vunpack.c.l.b16 %v2053
    %v2121 = vunpack.c.l.b16 %v2054
    %v2122 = vunpack.c.l.b16 %v2055
    %v2123 = vpack.c.b16 %v2092, %v2091
    %v2124 = vpack.c.b16 %v2094, %v2093
    %v2125 = vpack.c.b16 %v2096, %v2095
    %v2126 = vpack.c.b16 %v2098, %v2097
    %v2127 = vpack.c.b16 %v2100, %v2099
    %v2128 = vpack.c.b16 %v2102, %v2101
    %v2129 = vpack.c.b16 %v2104, %v2103
    %v2130 = vpack.c.b16 %v2106, %v2105
    %v2131 = vpack.c.b16 %v2108, %v2107
    %v2132 = vpack.c.b16 %v2110, %v2109
    %v2133 = vpack.c.b16 %v2112, %v2111
    %v2134 = vpack.c.b16 %v2114, %v2113
    %v2135 = vpack.c.b16 %v2116, %v2115
    %v2136 = vpack.c.b16 %v2118, %v2117
    %v2137 = vpack.c.b16 %v2120, %v2119
    %v2138 = vpack.c.b16 %v2122, %v2121
    %2155 = vmatpush.bf16.msra.mxu0 %v2130
    %2156 = vmatpush.bf16.msra.mxu0 %v2129
    %2157 = vmatpush.bf16.msra.mxu0 %v2128
    %2158 = vmatpush.bf16.msra.mxu0 %v2127
    %2159 = vmatpush.bf16.msra.mxu0 %v2126
    %2160 = vmatpush.bf16.msra.mxu0 %v2125
    %2161 = vmatpush.bf16.msra.mxu0 %v2124
    %2162 = vmatpush.bf16.msra.mxu0 %v2123
    %2163 = vmatmul.bf16.gmra.mxu0 %v2008
    %v2164 = vpop.f32.mrf.mxu0
    %v2165 = vadd.f32 %v2057, %v2164
    %v2166 = vpop.f32.mrf.mxu0
    %v2167 = vadd.f32 %v2057, %v2166
    %2168 = vmatmul.bf16.gmra.mxu0 %v2010
    %v2169 = vpop.f32.mrf.mxu0
    %v2170 = vadd.f32 %v2057, %v2169
    %v2171 = vpop.f32.mrf.mxu0
    %v2172 = vadd.f32 %v2057, %v2171
    %2173 = vmatmul.bf16.gmra.mxu0 %v2012
    %v2174 = vpop.f32.mrf.mxu0
    %v2175 = vadd.f32 %v2057, %v2174
    %v2176 = vpop.f32.mrf.mxu0
    %v2177 = vadd.f32 %v2057, %v2176
    %2178 = vmatmul.bf16.gmra.mxu0 %v2014
    %v2179 = vpop.f32.mrf.mxu0
    %v2180 = vadd.f32 %v2057, %v2179
    %v2181 = vpop.f32.mrf.mxu0
    %v2182 = vadd.f32 %v2057, %v2181
    %2183 = vmatmul.bf16.gmra.mxu0 %v2016
    %v2184 = vpop.f32.mrf.mxu0
    %v2185 = vadd.f32 %v2057, %v2184
    %v2186 = vpop.f32.mrf.mxu0
    %v2187 = vadd.f32 %v2057, %v2186
    %2188 = vmatmul.bf16.gmra.mxu0 %v2018
    %v2189 = vpop.f32.mrf.mxu0
    %v2190 = vadd.f32 %v2057, %v2189
    %v2191 = vpop.f32.mrf.mxu0
    %v2192 = vadd.f32 %v2057, %v2191
    %2193 = vmatmul.bf16.gmra.mxu0 %v2020
    %v2194 = vpop.f32.mrf.mxu0
    %v2195 = vadd.f32 %v2057, %v2194
    %v2196 = vpop.f32.mrf.mxu0
    %v2197 = vadd.f32 %v2057, %v2196
    %2198 = vmatmul.bf16.gmra.mxu0 %v2022
    %v2199 = vpop.f32.mrf.mxu0
    %v2200 = vadd.f32 %v2057, %v2199
    %v2201 = vpop.f32.mrf.mxu0
    %v2202 = vadd.f32 %v2057, %v2201
    %2203 = vdwg.mxu0
    %2204 = vmatpush.bf16.msra.mxu0 %v2138
    %2205 = vmatpush.bf16.msra.mxu0 %v2137
    %2206 = vmatpush.bf16.msra.mxu0 %v2136
    %2207 = vmatpush.bf16.msra.mxu0 %v2135
    %2208 = vmatpush.bf16.msra.mxu0 %v2134
    %2209 = vmatpush.bf16.msra.mxu0 %v2133
    %2210 = vmatpush.bf16.msra.mxu0 %v2132
    %2211 = vmatpush.bf16.msra.mxu0 %v2131
    %2212 = vmatmul.bf16.gmra.mxu0 %v2009
    %v2213 = vpop.f32.mrf.mxu0
    %v2214 = vadd.f32 %v2165, %v2213
    %v2215 = vpop.f32.mrf.mxu0
    %v2216 = vadd.f32 %v2167, %v2215
    %2217 = vmatmul.bf16.gmra.mxu0 %v2011
    %v2218 = vpop.f32.mrf.mxu0
    %v2219 = vadd.f32 %v2170, %v2218
    %v2220 = vpop.f32.mrf.mxu0
    %v2221 = vadd.f32 %v2172, %v2220
    %2222 = vmatmul.bf16.gmra.mxu0 %v2013
    %v2223 = vpop.f32.mrf.mxu0
    %v2224 = vadd.f32 %v2175, %v2223
    %v2225 = vpop.f32.mrf.mxu0
    %v2226 = vadd.f32 %v2177, %v2225
    %2227 = vmatmul.bf16.gmra.mxu0 %v2015
    %v2228 = vpop.f32.mrf.mxu0
    %v2229 = vadd.f32 %v2180, %v2228
    %v2230 = vpop.f32.mrf.mxu0
    %v2231 = vadd.f32 %v2182, %v2230
    %2232 = vmatmul.bf16.gmra.mxu0 %v2017
    %v2233 = vpop.f32.mrf.mxu0
    %v2234 = vadd.f32 %v2185, %v2233
    %v2235 = vpop.f32.mrf.mxu0
    %v2236 = vadd.f32 %v2187, %v2235
    %2237 = vmatmul.bf16.gmra.mxu0 %v2019
    %v2238 = vpop.f32.mrf.mxu0
    %v2239 = vadd.f32 %v2190, %v2238
    %v2240 = vpop.f32.mrf.mxu0
    %v2241 = vadd.f32 %v2192, %v2240
    %2242 = vmatmul.bf16.gmra.mxu0 %v2021
    %v2243 = vpop.f32.mrf.mxu0
    %v2244 = vadd.f32 %v2195, %v2243
    %v2245 = vpop.f32.mrf.mxu0
    %v2246 = vadd.f32 %v2197, %v2245
    %2247 = vmatmul.bf16.gmra.mxu0 %v2023
    %v2248 = vpop.f32.mrf.mxu0
    %v2249 = vadd.f32 %v2200, %v2248
    %v2250 = vpop.f32.mrf.mxu0
    %v2251 = vadd.f32 %v2202, %v2250
    %2252 = vdwg.mxu0
    %2253 = vst [vmem:[#allocation7] sm:$0xff] %v2214
    %2254 = vst [vmem:[#allocation7 + $0x8] sm:$0xff] %v2216
    %2255 = vst [vmem:[#allocation7 + $0x10] sm:$0xff] %v2219
    %2256 = vst [vmem:[#allocation7 + $0x18] sm:$0xff] %v2221
    %2257 = vst [vmem:[#allocation7 + $0x20] sm:$0xff] %v2224
    %2258 = vst [vmem:[#allocation7 + $0x28] sm:$0xff] %v2226
    %2259 = vst [vmem:[#allocation7 + $0x30] sm:$0xff] %v2229
    %2260 = vst [vmem:[#allocation7 + $0x38] sm:$0xff] %v2231
    %2261 = vst [vmem:[#allocation7 + $0x40] sm:$0xff] %v2234
    %2262 = vst [vmem:[#allocation7 + $0x48] sm:$0xff] %v2236
    %2263 = vst [vmem:[#allocation7 + $0x50] sm:$0xff] %v2239
    %2264 = vst [vmem:[#allocation7 + $0x58] sm:$0xff] %v2241
    %2265 = vst [vmem:[#allocation7 + $0x60] sm:$0xff] %v2244
    %2266 = vst [vmem:[#allocation7 + $0x68] sm:$0xff] %v2246
    %2267 = vst [vmem:[#allocation7 + $0x70] sm:$0xff] %v2249
    %2268 = vst [vmem:[#allocation7 + $0x78] sm:$0xff] %v2251
    // Predicated region
    $region38: #{mlp_forward.1} parent=1 // pred_check
      _
    $region39: #{mlp_forward.1} parent=1 // pred_check_branch
      %2270 = sbr.rel (0) target = $region41
    $region40: #{mlp_forward.1} parent=1 // pred_region
      %2272 = vsyncadd [#allocation4], 1920
      %s2273 = sshll.u32 [#allocation7], 4
      %s2274 = int_to_ptr.vmem [resolvable:$true] %s2273
      %s2275 = sshll.u32 %s7, 4
      %s2276 = int_to_ptr.hbm [resolvable:$true] %s2275
      %2281 = dma.vmem_to_hbm [thread:$0]  %s2274, 128, %s2276, [#allocation4], 128, 128, 8
    $region41: #{mlp_forward.1} parent=1 // pred_fallthru
      _
    // Predicated region
    $region42: #{mlp_forward.1} parent=1 // pred_check
      _
    $region43: #{mlp_forward.1} parent=1 // pred_check_branch
      %2283 = sbr.rel (0) target = $region45
    $region44: #{mlp_forward.1} parent=1 // pred_region
      %2285 = dma.done [#allocation4], 2048
    $region45: #{mlp_forward.1} parent=1 // pred_fallthru
      _
    %2286 = vsyncpa [#allocation3], 1
    %2287 = vsyncpa [#allocation6], 1
    %2288 = vsyncpa [#allocation4], 1

</llo_original>
